<compile_context>
chip_gen: v6e
topology: v6e:2x2x1
jax: 0.10.0
libtpu: 0.0.40
codegen_flags: <defaults>
</compile_context>

<pallas_src>
import functools

import numpy as np
import jax
import jax.numpy as jnp
from jax.experimental import pallas as pl
from jax.experimental.pallas import tpu as pltpu

TV = 256        # voxel tile (lanes of every scatter output block; 256-wide MXU)
TN_SUM = 1024   # point tile for the one-hot segment-sum matmul
TN_MAX = 512    # point tile for the segmented-scan segment-max
TNP = 8192      # point tile for the fused Linear+BN+ReLU matmul
C_SUM = 8       # rows of the transposed sum operand: [x, y, z, 1, 0, 0, 0, 0]


# ----------------------------------------------------------------------------
# Pallas kernels
# ----------------------------------------------------------------------------
def _scatter_sum_kernel(vt_ref, pt_ref, first_ref, valid_ref, seg_ref, xyz1t_ref,
                        out_ref):
    """Transposed segment-sum via one-hot matmul: (8,TN)@(TN,TV) -> (8,TV).
    Row 3 of xyz1t is 1.0 for real points, so the per-pillar point count is folded
    into the same matmul.  grid = (num_work,) over overlapping tile pairs only."""
    s = pl.program_id(0)

    @pl.when(first_ref[s] == 1)
    def _():
        out_ref[...] = jnp.zeros_like(out_ref)

    @pl.when(valid_ref[s] == 1)
    def _():
        seg = seg_ref[...]                                    # (1, TN) int32, lane-dense
        tn = seg.shape[1]
        tv = out_ref.shape[1]
        vids = vt_ref[s] * tv + jax.lax.broadcasted_iota(jnp.int32, (tv, tn), 0)
        onehot_t = (seg == vids).astype(jnp.float32)          # (TV, TN)
        out_ref[...] += jnp.dot(xyz1t_ref[...], onehot_t.T,
                                preferred_element_type=jnp.float32)


def _scatter_max_kernel(vt_ref, pt_ref, first_ref, valid_ref, seg_ref, x_ref,
                        out_ref, *, scan_steps):
    """Segment-max over sorted, compressed segments (channels on sublanes, points on
    lanes).  A segmented prefix-max scan (pltpu.roll doubling steps) lands each
    pillar's within-tile max on one collector lane; a collector-masked one-hot matmul
    scatters those lanes onto the (C, TV) block, maximum-accumulated across tiles.
    NOTE: the zero init is exact only because every input routed here is post-ReLU
    (>= 0); signed inputs would need a -inf init."""
    s = pl.program_id(0)

    @pl.when(first_ref[s] == 1)
    def _():
        out_ref[...] = jnp.zeros_like(out_ref)

    @pl.when(valid_ref[s] == 1)
    def _():
        seg = seg_ref[...]                                    # (1, TN) int32, sorted
        xt = x_ref[...].astype(jnp.float32)                   # (C, TN)
        tn = seg.shape[1]
        tv = out_ref.shape[1]

        # segmented prefix-max scan along lanes (Hillis-Steele doubling)
        for k in range(scan_steps):
            d = 1 << k
            seg_d = pltpu.roll(seg, d, axis=1)
            x_d = pltpu.roll(xt, d, axis=1)
            xt = jnp.where(seg_d == seg, jnp.maximum(xt, x_d), xt)

        # Collector lanes: exactly one lane per (pillar, tile) holding its within-tile
        # max.  (seg != roll(seg, tn-1)) marks segment heads or tails (either works,
        # independent of the roll direction).  If the whole tile is one segment the
        # scan has already propagated the full max to every lane, so force one lane.
        lane = jax.lax.broadcasted_iota(jnp.int32, (1, tn), 1)
        boundary = seg != pltpu.roll(seg, tn - 1, axis=1)
        single = jnp.min(seg) == jnp.max(seg)
        collector = jnp.logical_or(boundary,
                                   jnp.logical_and(lane == tn - 1, single))

        vids = vt_ref[s] * tv + jax.lax.broadcasted_iota(jnp.int32, (tv, tn), 0)
        onehot_t = jnp.logical_and(seg == vids, collector).astype(jnp.float32)
        contrib = jnp.dot(xt, onehot_t.T, preferred_element_type=jnp.float32)
        out_ref[...] = jnp.maximum(out_ref[...], contrib.astype(out_ref.dtype))


def _pfn1_kernel(x_ref, w_ref, scale_ref, shift_ref, o_ref):
    """Fused Linear(no bias) + folded BatchNorm1d + ReLU on the transposed stream:
    (units, c_in) @ (c_in, TNP), bf16 MXU operands, f32 accumulate + f32 epilogue."""
    y = jnp.dot(w_ref[...], x_ref[...], preferred_element_type=jnp.float32)
    y = y * scale_ref[...] + shift_ref[...]
    o_ref[...] = jnp.maximum(y, 0.0).astype(o_ref.dtype)


def _pfn2_kernel(x1_ref, x2_ref, w1_ref, w2_ref, scale_ref, shift_ref, o_ref):
    """Same, with the previous layer's [x, x_max] concat kept un-materialized: the
    weight is split and the two matmuls accumulate into one f32 tile."""
    y = jnp.dot(w1_ref[...], x1_ref[...], preferred_element_type=jnp.float32)
    y = y + jnp.dot(w2_ref[...], x2_ref[...], preferred_element_type=jnp.float32)
    y = y * scale_ref[...] + shift_ref[...]
    o_ref[...] = jnp.maximum(y, 0.0).astype(o_ref.dtype)


# ----------------------------------------------------------------------------
# Host-side work-list construction (points are sorted by compressed pillar id)
# ----------------------------------------------------------------------------
def _build_worklist(seg_sorted, u, tn, tv):
    """Work items over (voxel-tile, point-tile) pairs that actually overlap.
    Returns int32 arrays (vt, pt, first, valid); the list is padded to a power-of-two
    length with no-op items so pallas_call shapes stay bucketed."""
    n_vtiles = -(-u // tv)
    starts = np.searchsorted(seg_sorted, np.arange(n_vtiles) * tv, side='left')
    ends = np.searchsorted(seg_sorted, (np.arange(n_vtiles) + 1) * tv, side='left')
    vt, pt, first, valid = [], [], [], []
    for vi in range(n_vtiles):
        p0, p1 = int(starts[vi]), int(ends[vi])
        if p1 <= p0:          # cannot happen: pillar ids are contiguous 0..u-1
            continue
        t0 = p0 // tn
        for t in range(t0, (p1 - 1) // tn + 1):
            vt.append(vi)
            pt.append(t)
            first.append(1 if t == t0 else 0)
            valid.append(1)
    num = len(vt)
    bucket = max(8, int(2 ** int(np.ceil(np.log2(num)))))
    while len(vt) < bucket:   # no-op padding: same blocks, no compute, no re-init
        vt.append(vt[-1]); pt.append(pt[-1]); first.append(0); valid.append(0)
    to = lambda z: np.asarray(z, np.int32)
    return to(vt), to(pt), to(first), to(valid)


# ----------------------------------------------------------------------------
# Pallas wrappers
# ----------------------------------------------------------------------------
def scatter_sum_transposed(worklist, seg_row, xyz1t, u_pad):
    vt, pt, first, valid = (jnp.asarray(a) for a in worklist)
    num_work = int(vt.shape[0])
    c = xyz1t.shape[0]
    return pl.pallas_call(
        _scatter_sum_kernel,
        out_shape=jax.ShapeDtypeStruct((c, u_pad), jnp.float32),
        grid_spec=pltpu.PrefetchScalarGridSpec(
            num_scalar_prefetch=4,
            grid=(num_work,),
            in_specs=[pl.BlockSpec((1, TN_SUM), lambda s, v, p, f, q: (0, p[s])),
                      pl.BlockSpec((c, TN_SUM), lambda s, v, p, f, q: (0, p[s]))],
            out_specs=pl.BlockSpec((c, TV), lambda s, v, p, f, q: (0, v[s]))),
        compiler_params=pltpu.CompilerParams(
            dimension_semantics=("arbitrary",)),
    )(vt, pt, first, valid, seg_row, xyz1t)


def scatter_max_transposed(worklist, seg_row, x_t, u_pad, scan_steps):
    vt, pt, first, valid = (jnp.asarray(a) for a in worklist)
    num_work = int(vt.shape[0])
    c = x_t.shape[0]
    return pl.pallas_call(
        functools.partial(_scatter_max_kernel, scan_steps=scan_steps),
        out_shape=jax.ShapeDtypeStruct((c, u_pad), jnp.bfloat16),
        grid_spec=pltpu.PrefetchScalarGridSpec(
            num_scalar_prefetch=4,
            grid=(num_work,),
            in_specs=[pl.BlockSpec((1, TN_MAX), lambda s, v, p, f, q: (0, p[s])),
                      pl.BlockSpec((c, TN_MAX), lambda s, v, p, f, q: (0, p[s]))],
            out_specs=pl.BlockSpec((c, TV), lambda s, v, p, f, q: (0, v[s]))),
        compiler_params=pltpu.CompilerParams(
            dimension_semantics=("arbitrary",)),
    )(vt, pt, first, valid, seg_row, x_t)


def pfn_linear_bn_relu(xs, wts, scale, shift):
    """xs: list of 1 or 2 transposed bf16 streams (c_i, n_pad); wts: matching
    (units, c_i) bf16 weight slices.  Returns (units, n_pad) bf16."""
    n_pad = xs[0].shape[1]
    units = wts[0].shape[0]
    kernel = _pfn1_kernel if len(xs) == 1 else _pfn2_kernel
    in_specs = [pl.BlockSpec((x.shape[0], TNP), lambda i: (0, i)) for x in xs]
    in_specs += [pl.BlockSpec(tuple(w.shape), lambda i: (0, 0)) for w in wts]
    in_specs += [pl.BlockSpec((units, 1), lambda i: (0, 0))] * 2
    return pl.pallas_call(
        kernel,
        out_shape=jax.ShapeDtypeStruct((units, n_pad), jnp.bfloat16),
        grid_spec=pltpu.PrefetchScalarGridSpec(
            num_scalar_prefetch=0,
            grid=(n_pad // TNP,),
            in_specs=in_specs,
            out_specs=pl.BlockSpec((units, TNP), lambda i: (0, i))),
        compiler_params=pltpu.CompilerParams(
            dimension_semantics=("parallel",)),
    )(*xs, *wts,
      jnp.asarray(scale, jnp.float32).reshape(units, 1),
      jnp.asarray(shift, jnp.float32).reshape(units, 1))


# ----------------------------------------------------------------------------
# Parameter init (deterministic, matches DynamicPFNLayer shapes)
# ----------------------------------------------------------------------------
def init_params(key, num_input_features, num_filters, eps=1e-3):
    dims = [num_input_features + 5] + list(num_filters)
    layers = []
    for i in range(len(dims) - 1):
        last = (i == len(dims) - 2)
        in_f = dims[i]
        out_f = dims[i + 1]
        units = out_f if last else out_f // 2
        key, k1, k2, k3, k4, k5 = jax.random.split(key, 6)
        w = jax.random.normal(k1, (in_f, units), jnp.float32) / np.sqrt(in_f)
        gamma = 1.0 + 0.1 * jax.random.normal(k2, (units,), jnp.float32)
        beta = 0.1 * jax.random.normal(k3, (units,), jnp.float32)
        rmean = 0.1 * jax.random.normal(k4, (units,), jnp.float32)
        rvar = 1.0 + 0.1 * jax.random.uniform(k5, (units,), jnp.float32)
        scale = gamma / jnp.sqrt(rvar + eps)
        shift = beta - rmean * scale
        layers.append(dict(w=w, scale=scale, shift=shift, last=last))
    return layers


# ----------------------------------------------------------------------------
# Forward pass (host preprocessing + Pallas kernels + thin XLA glue)
# ----------------------------------------------------------------------------
def dynamic_pillar_feature_net_forward(points, params, voxel_size, pc_range):
    vs_np = np.asarray(voxel_size, np.float32)          # (2,)
    pr_np = np.asarray(pc_range, np.float32)            # (4,) = xmin, ymin, xmax, ymax
    grid_size = np.round((pr_np[2:] - pr_np[:2]) / vs_np).astype(np.int64)
    gx, gy = int(grid_size[0]), int(grid_size[1])
    num_voxels = gx * gy
    out_dim = int(params[-1]['w'].shape[1])

    # ---- host preprocessing: mask, unique (occupied pillars), sort by pillar ----
    pts = np.asarray(points, np.float32)
    coords_f = (pts[:, 1:3] - pr_np[:2]) / vs_np
    mask = ((coords_f[:, 0] >= 0) & (coords_f[:, 0] < gx) &
            (coords_f[:, 1] >= 0) & (coords_f[:, 1] < gy))
    pts = pts[mask]
    coords = coords_f[mask].astype(np.int64)            # truncation == torch .long()
    n = pts.shape[0]
    if n == 0:
        return jnp.zeros((0, out_dim, gy, gx), jnp.float32)

    batch_ids, batch_inv = np.unique(pts[:, 0].astype(np.int64), return_inverse=True)
    batch_size = int(batch_ids.shape[0])                # contiguous remap of batch ids
    point_index = batch_inv * num_voxels + coords[:, 1] * gx + coords[:, 0]
    unq, unq_inv = np.unique(point_index, return_inverse=True)
    u = int(unq.shape[0])                                # occupied pillars only

    order = np.argsort(unq_inv, kind='stable')           # group points by pillar id
    pts = pts[order]
    coords = coords[order]
    seg = unq_inv[order].astype(np.int32)

    # bucketed padded sizes (small set of compiled shapes across frames)
    n_pad = TNP * int(2 ** int(np.ceil(np.log2(max(1, -(-n // TNP))))))
    u_pad = TV * int(2 ** int(np.ceil(np.log2(max(1, -(-u // TV))))))
    max_cnt = int(np.bincount(seg, minlength=1).max())
    scan_steps = 0 if max_cnt <= 1 else int(np.ceil(np.log2(min(max_cnt, TN_MAX))))

    seg_row_np = np.full((1, n_pad), u_pad, np.int32)     # sentinel outside every tile
    seg_row_np[0, :n] = seg
    seg_gather_np = np.full((n_pad,), u - 1, np.int32)    # padded rows -> a real pillar
    seg_gather_np[:n] = seg

    ptsT_np = np.zeros((pts.shape[1], n_pad), np.float32)     # transposed point stream
    ptsT_np[:, :n] = pts.T
    coordsT_np = np.zeros((2, n_pad), np.float32)
    coordsT_np[:, :n] = coords[:, :2].astype(np.float32).T
    xyz1t_np = np.zeros((C_SUM, n_pad), np.float32)           # [x, y, z, 1, 0...]^T
    xyz1t_np[0:3, :n] = pts[:, 1:4].T
    xyz1t_np[3, :n] = 1.0

    wl_sum = _build_worklist(seg, u, TN_SUM, TV)
    wl_max = _build_worklist(seg, u, TN_MAX, TV)

    seg_row = jnp.asarray(seg_row_np)
    seg_gather = jnp.asarray(seg_gather_np)
    ptsT = jnp.asarray(ptsT_np)
    coordsT = jnp.asarray(coordsT_np)
    xyz1t = jnp.asarray(xyz1t_np)
    vs = jnp.asarray(vs_np)
    pr2 = jnp.asarray(pr_np[:2])

    # ---- scatter_mean(points[:,1:4]) : lane-dense one-hot matmul (counts folded) ----
    sums = scatter_sum_transposed(wl_sum, seg_row, xyz1t, u_pad)      # (8, u_pad) f32
    means = sums[0:3] / jnp.maximum(sums[3:4], 1.0)                   # (3, u_pad)
    means_pp = jnp.take(means, seg_gather, axis=1)                    # gather (glue)

    # ---- pillar feature augmentation (elementwise glue, transposed / lane-dense) ----
    f_cluster = ptsT[1:4] - means_pp
    f_center = ptsT[1:3] - (coordsT * vs[:, None] + vs[:, None] * 0.5 + pr2[:, None])
    featsT = jnp.concatenate([ptsT[1:], f_cluster, f_center],
                             axis=0).astype(jnp.bfloat16)             # (9, n_pad)

    # ---- PFN layers: fused matmul+BN+ReLU kernel + vectorized segment-max kernel ----
    feats_list = [featsT]
    feat_max_t = None
    for layer in params:
        wt = jnp.asarray(layer['w']).T.astype(jnp.bfloat16)           # (units, in_f)
        if len(feats_list) == 1:
            wts = [wt]
        else:
            c1 = feats_list[0].shape[0]
            wts = [wt[:, :c1], wt[:, c1:]]                            # x / x_max halves
        x_t = pfn_linear_bn_relu(feats_list, wts, layer['scale'], layer['shift'])
        feat_max_t = scatter_max_transposed(wl_max, seg_row, x_t, u_pad, scan_steps)
        if layer['last']:
            # final scatter_max(x_max) == feat_max_t (x_max is constant per pillar)
            break
        x_max_t = jnp.take(feat_max_t, seg_gather, axis=1)            # gather (glue)
        feats_list = [x_t, x_max_t]

    # ---- scatter occupied-pillar features into the dense canvas (glue) ----
    feat_max = feat_max_t[:, :u].astype(jnp.float32).T                # (u, out_dim)
    canvas = jnp.zeros((batch_size * num_voxels, out_dim), jnp.float32)
    canvas = canvas.at[jnp.asarray(unq.astype(np.int32))].set(feat_max)
    canvas = canvas.reshape(batch_size, gy, gx, out_dim)
    return jnp.transpose(canvas, (0, 3, 1, 2))                        # NCHW


# ----------------------------------------------------------------------------
# Pure NumPy reference (follows the torch code, incl. unique / unq_inv)
# ----------------------------------------------------------------------------
def reference_forward(points, params_np, voxel_size, pc_range):
    vs = np.asarray(voxel_size, np.float64)
    pr = np.asarray(pc_range, np.float64)
    grid = np.round((pr[2:] - pr[:2]) / vs).astype(np.int64)
    gx, gy = int(grid[0]), int(grid[1])
    nv = gx * gy
    pts = np.asarray(points, np.float64)
    coords_f = (pts[:, 1:3] - pr[:2]) / vs
    mask = ((coords_f[:, 0] >= 0) & (coords_f[:, 0] < gx) &
            (coords_f[:, 1] >= 0) & (coords_f[:, 1] < gy))
    pts = pts[mask]
    coords = coords_f[mask].astype(np.int64)
    bidx = pts[:, 0].astype(np.int64)
    pidx = bidx * nv + coords[:, 1] * gx + coords[:, 0]
    unq, unq_inv = np.unique(pidx, return_inverse=True)
    u = unq.shape[0]

    sums = np.zeros((u, 3)); cnts = np.zeros((u, 1))
    np.add.at(sums, unq_inv, pts[:, 1:4]); np.add.at(cnts, unq_inv, 1.0)
    means = sums / cnts
    f_cluster = pts[:, 1:4] - means[unq_inv]
    f_center = pts[:, 1:3] - (coords.astype(np.float64) * vs + vs / 2 + pr[:2])
    feats = np.concatenate([pts[:, 1:], f_cluster, f_center], axis=1)

    def smax(x, inv, u):
        out = np.full((u, x.shape[1]), -np.inf)
        np.maximum.at(out, inv, x)
        return out

    for layer in params_np:
        x = feats @ layer['w']
        x = np.maximum(x * layer['scale'] + layer['shift'], 0.0)
        fm = smax(x, unq_inv, u)
        x_max = fm[unq_inv]
        feats = x_max if layer['last'] else np.concatenate([x, x_max], axis=1)
    fm = smax(feats, unq_inv, u)
    bs = np.unique(pts[:, 0]).shape[0]
    canvas = np.zeros((bs * nv, feats.shape[1]))
    canvas[unq] = fm
    return canvas.reshape(bs, gy, gx, -1).transpose(0, 3, 1, 2)


# ----------------------------------------------------------------------------
if __name__ == "__main__":
    key = jax.random.PRNGKey(0)
    num_input_features = 4              # x, y, z, r  (points col 0 is batch idx)
    num_filters = (32, 64)              # two PFN layers (exercises the split-W path)
    voxel_size = [0.5, 0.5]
    pc_range = [0.0, 0.0, 8.0, 8.0]     # -> 16 x 16 pillar grid
    N = 256

    k1, k2, k3, kp = jax.random.split(key, 4)
    xy = jax.random.uniform(k1, (N, 2), jnp.float32, minval=0.05, maxval=7.95)
    z = jax.random.uniform(k2, (N, 1), jnp.float32, minval=-2.0, maxval=2.0)
    r = jax.random.uniform(k3, (N, 1), jnp.float32, minval=0.0, maxval=1.0)
    bidx = jnp.concatenate([jnp.zeros((N // 2, 1), jnp.float32),
                            jnp.ones((N - N // 2, 1), jnp.float32)], axis=0)
    points = jnp.concatenate([bidx, xy, z, r], axis=1)          # (256, 5)

    params = init_params(kp, num_input_features, num_filters)
    out = dynamic_pillar_feature_net_forward(points, params, voxel_size, pc_range)
    out = jax.block_until_ready(out)

    params_np = [dict(w=np.asarray(l['w'], np.float64),
                      scale=np.asarray(l['scale'], np.float64),
                      shift=np.asarray(l['shift'], np.float64),
                      last=l['last']) for l in params]
    ref = reference_forward(np.asarray(points, np.float64), params_np,
                            voxel_size, pc_range)
    out_np = np.asarray(out, np.float64)
    assert out_np.shape == ref.shape == (2, 64, 16, 16), (out_np.shape, ref.shape)
    assert np.all(np.isfinite(out_np))
    err = np.max(np.abs(out_np - ref))
    scale = np.max(np.abs(ref)) + 1e-6
    assert err <= 0.05 * scale, f"max abs err {err} vs scale {scale}"
    print("KERNEL_OK")
</pallas_src>

<mosaic_0001>
module attributes {stable_mosaic.version = 11 : i64} {
  func.func @_scatter_sum_kernel(%arg0: i32, %arg1: memref<8xi32, #tpu.memory_space<smem>>, %arg2: memref<8xi32, #tpu.memory_space<smem>>, %arg3: memref<8xi32, #tpu.memory_space<smem>>, %arg4: memref<8xi32, #tpu.memory_space<smem>>, %arg5: memref<1x1024xi32, #tpu.memory_space<vmem>>, %arg6: memref<8x1024xf32, #tpu.memory_space<vmem>>, %arg7: memref<8x256xf32, #tpu.memory_space<vmem>>) attributes {dimension_semantics = [#tpu.dimension_semantics<arbitrary>], iteration_bounds = array<i64: 8>, scalar_prefetch = 4 : i64, scratch_operands = 0 : i64, tpu.core_type = #tpu.core_type<tc>, window_params = [{transform_indices = @transform_0, window_bounds = array<i64: 1, 1024>}, {transform_indices = @transform_1, window_bounds = array<i64: 8, 1024>}, {transform_indices = @transform_2, window_bounds = array<i64: 8, 256>}]} {
    %0 = arith.index_cast %arg0 : i32 to index
    %1 = memref.load %arg3[%0] : memref<8xi32, #tpu.memory_space<smem>>
    %c1_i32 = arith.constant 1 : i32
    %2 = arith.cmpi eq, %1, %c1_i32 : i32
    %3 = arith.extui %2 : i1 to i32
    %c0_i32 = arith.constant 0 : i32
    %4 = arith.cmpi ne, %3, %c0_i32 : i32
    scf.if %4 {
      %cst = arith.constant 0.000000e+00 : f32
      %10 = vector.broadcast %cst : f32 to vector<8x256xf32>
      %c0 = arith.constant 0 : index
      %c0_2 = arith.constant 0 : index
      %11 = vector.load %arg7[%c0, %c0_2] : memref<8x256xf32, #tpu.memory_space<vmem>>, vector<8x256xf32>
      tpu.vector_store %arg7[%c0, %c0_2], %10 {strides = array<i32>} : memref<8x256xf32, #tpu.memory_space<vmem>>, vector<8x256xf32>,
    } else {
    }
    %5 = arith.index_cast %arg0 : i32 to index
    %6 = memref.load %arg4[%5] : memref<8xi32, #tpu.memory_space<smem>>
    %c1_i32_0 = arith.constant 1 : i32
    %7 = arith.cmpi eq, %6, %c1_i32_0 : i32
    %8 = arith.extui %7 : i1 to i32
    %c0_i32_1 = arith.constant 0 : i32
    %9 = arith.cmpi ne, %8, %c0_i32_1 : i32
    scf.if %9 {
      %c0 = arith.constant 0 : index
      %c0_2 = arith.constant 0 : index
      %10 = vector.load %arg5[%c0, %c0_2] : memref<1x1024xi32, #tpu.memory_space<vmem>>, vector<1x1024xi32>
      %11 = arith.index_cast %arg0 : i32 to index
      %12 = memref.load %arg1[%11] : memref<8xi32, #tpu.memory_space<smem>>
      %c256_i32 = arith.constant 256 : i32
      %13 = arith.muli %12, %c256_i32 : i32
      %14 = tpu.iota {dimensions = array<i32: 0>} : vector<256x1024xi32>
      %15 = vector.broadcast %13 : i32 to vector<256x1024xi32>
      %16 = arith.addi %15, %14 : vector<256x1024xi32>
      %17 = vector.broadcast %10 : vector<1x1024xi32> to vector<256x1024xi32>
      %18 = arith.cmpi eq, %17, %16 : vector<256x1024xi32>
      %19 = arith.extui %18 : vector<256x1024xi1> to vector<256x1024xi32>
      %20 = arith.sitofp %19 : vector<256x1024xi32> to vector<256x1024xf32>
      %c0_3 = arith.constant 0 : index
      %c0_4 = arith.constant 0 : index
      %21 = vector.load %arg7[%c0_3, %c0_4] : memref<8x256xf32, #tpu.memory_space<vmem>>, vector<8x256xf32>
      %c0_5 = arith.constant 0 : index
      %c0_6 = arith.constant 0 : index
      %22 = vector.load %arg6[%c0_5, %c0_6] : memref<8x1024xf32, #tpu.memory_space<vmem>>, vector<8x1024xf32>
      %23 = tpu.transpose %20, [1, 0] : vector<256x1024xf32> -> vector<1024x256xf32>
      %cst = arith.constant dense<0.000000e+00> : vector<8x256xf32>
      %24 = tpu.matmul %22, %23, %cst {dimension_numbers = #tpu.dot_dimension_numbers<[1], [0], [0], [1], [0, 0, 1, 1], [], []>} : vector<8x1024xf32>, vector<1024x256xf32>, vector<8x256xf32> -> vector<8x256xf32>
      %25 = arith.addf %21, %24 : vector<8x256xf32>
      %c0_7 = arith.constant 0 : index
      %c0_8 = arith.constant 0 : index
      %26 = vector.load %arg7[%c0_7, %c0_8] : memref<8x256xf32, #tpu.memory_space<vmem>>, vector<8x256xf32>
      tpu.vector_store %arg7[%c0_7, %c0_8], %25 {strides = array<i32>} : memref<8x256xf32, #tpu.memory_space<vmem>>, vector<8x256xf32>,
    } else {
    }
    return
  }
  func.func @transform_0(%arg0: i32, %arg1: memref<8xi32, #tpu.memory_space<smem>>, %arg2: memref<8xi32, #tpu.memory_space<smem>>, %arg3: memref<8xi32, #tpu.memory_space<smem>>, %arg4: memref<8xi32, #tpu.memory_space<smem>>) -> (i32, i32) {
    %0 = arith.index_cast %arg0 : i32 to index
    %1 = memref.load %arg2[%0] : memref<8xi32, #tpu.memory_space<smem>>
    %c0_i32 = arith.constant 0 : i32
    %c0_i32_0 = arith.constant 0 : i32
    return %c0_i32, %1 : i32, i32
  }
  func.func @transform_1(%arg0: i32, %arg1: memref<8xi32, #tpu.memory_space<smem>>, %arg2: memref<8xi32, #tpu.memory_space<smem>>, %arg3: memref<8xi32, #tpu.memory_space<smem>>, %arg4: memref<8xi32, #tpu.memory_space<smem>>) -> (i32, i32) {
    %0 = arith.index_cast %arg0 : i32 to index
    %1 = memref.load %arg2[%0] : memref<8xi32, #tpu.memory_space<smem>>
    %c0_i32 = arith.constant 0 : i32
    %c0_i32_0 = arith.constant 0 : i32
    return %c0_i32, %1 : i32, i32
  }
  func.func @transform_2(%arg0: i32, %arg1: memref<8xi32, #tpu.memory_space<smem>>, %arg2: memref<8xi32, #tpu.memory_space<smem>>, %arg3: memref<8xi32, #tpu.memory_space<smem>>, %arg4: memref<8xi32, #tpu.memory_space<smem>>) -> (i32, i32) {
    %0 = arith.index_cast %arg0 : i32 to index
    %1 = memref.load %arg1[%0] : memref<8xi32, #tpu.memory_space<smem>>
    %c0_i32 = arith.constant 0 : i32
    %c0_i32_0 = arith.constant 0 : i32
    return %c0_i32, %1 : i32, i32
  }
}

</mosaic_0001>

<llo_original>
// kernel: tpu_custom_call.1
$region0: #{tpu_custom_call.1}
  #allocation0 [shape = 'u32[]', space=smem, size = 0x4, offset = 0x4, fixed_abs, tag = 'smem constant byte address 0x4 - core index']
  #allocation1 [shape = 'u32[144,128]{1,0:T(1,128)}', space=vmem, size = 0x12000, scoped, tag = 'internal scratch']
  #allocation2 [shape = 's32[1]{0}', space=sflag, size = 0x4, scoped, tag = 'scoped memory for tpu_custom_call.1']
  #allocation3 [shape = 'u8[512]{0}', space=smem, size = 0x200, scoped, tag = 'prefetched SMEM operand 0']
  #allocation4 [shape = 'u8[512]{0}', space=smem, size = 0x200, scoped, tag = 'prefetched SMEM operand 1']
  #allocation5 [shape = 'u8[512]{0}', space=smem, size = 0x200, scoped, tag = 'prefetched SMEM operand 2']
  #allocation6 [shape = 'u8[512]{0}', space=smem, size = 0x200, scoped, tag = 'prefetched SMEM operand 3']
  %s0 = inlined_call_operand.hbm [shape: s32[8], index: 0, kind: input, shape index: {}]
  %s1 = inlined_call_operand.vmem [shape: s32[8], index: 1, kind: input, shape index: {}]
  %s2 = inlined_call_operand.vmem [shape: s32[8], index: 2, kind: input, shape index: {}]
  %s3 = inlined_call_operand.vmem [shape: s32[8], index: 3, kind: input, shape index: {}]
  %s4 = inlined_call_operand.hbm [shape: s32[1,8192], index: 4, kind: input, shape index: {}]
  %s5 = inlined_call_operand.hbm [shape: f32[8,8192], index: 5, kind: input, shape index: {}]
  %s6 = inlined_call_operand.hbm [shape: f32[8,256], index: 6, kind: output, shape index: {}]
  %s7 = sld [smem:[#allocation0]]
  $region57: #{tpu_custom_call.1} parent=0
    _
  %s9 = ssub.s32 1, %s7
  %s10 = scalar_select 0, %s9, %s7
  %12 = dma.hbm_to_smem %s0, 16, [#allocation3], [#allocation2]
  %s13 = sshll.u32 %s1, 4
  %s14 = int_to_ptr.vmem [resolvable:$true] %s13
  %16 = dma.vmem_to_smem %s14, 16, [#allocation4], [#allocation2]
  %s17 = sshll.u32 %s2, 4
  %s18 = int_to_ptr.vmem [resolvable:$true] %s17
  %20 = dma.vmem_to_smem %s18, 16, [#allocation5], [#allocation2]
  %s21 = sshll.u32 %s3, 4
  %s22 = int_to_ptr.vmem [resolvable:$true] %s21
  %24 = dma.vmem_to_smem %s22, 16, [#allocation6], [#allocation2]
  %25 = dma.done [#allocation2], 64
  %26 = sfence
  $region1: #{tpu_custom_call.1} parent=0
    #allocation7 [shape = 'u8[8192]{0}', space=vmem, size = 0x2000, scoped, tag = 'input window, operand 4']
    #allocation8 [shape = 's32[2]{0}', space=sflag, size = 0x8, scoped, tag = 'scoped memory for tpu_custom_call.1']
    #allocation9 [shape = 's32[2]{0}', space=sflag, size = 0x8, scoped, tag = 'scoped memory for tpu_custom_call.1']
    #allocation10 [shape = 'u8[65536]{0}', space=vmem, size = 0x10000, scoped, tag = 'input window, operand 5']
    #allocation11 [shape = 's32[2]{0}', space=sflag, size = 0x8, scoped, tag = 'scoped memory for tpu_custom_call.1']
    #allocation12 [shape = 'u8[16384]{0}', space=vmem, size = 0x4000, scoped, tag = 'output window, operand 0']
    %27 = vsyncpa [#allocation8], 0
    %s28 = scalar_lea.sflag [#allocation8], 1
    %29 = vsyncpa %s28, 0
    %30 = vsyncpa [#allocation11], 0
    %s31 = scalar_lea.sflag [#allocation11], 1
    %32 = vsyncpa %s31, 0
    %33 = vsyncpa [#allocation9], 0
    %s34 = scalar_lea.sflag [#allocation9], 1
    %35 = vsyncpa %s34, 0
    loop: start=0, step=1, limit=10
    $region2: #{tpu_custom_call.1} parent=1 // loop_pre_header
      _
    $region3: #{tpu_custom_call.1} parent=1 // loop_header
      %s37 = sphi 0, %s41
      %p38 = scmp.ge.s32.totalorder %s37, 10
      %s49 = sphi 0, %s51
      %s52 = sphi 0, %s49
      %s53 = sphi 0, %s52
      %s69 = sphi 0, %s53
      %s77 = sphi 0, %s79
      %s80 = sphi 0, %s77
      %s81 = sphi 0, %s80
      %s97 = sphi 0, %s81
      %s105 = sphi 0, %s107
      %s108 = sphi 0, %s105
      %s109 = sphi 0, %s108
      %s125 = sphi 0, %s109
    $region4: #{tpu_custom_call.1} parent=1 // loop_header_branch
      %40 = sbr.rel (%p38) target = $region8
    $region5: #{tpu_custom_call.1} parent=1 // loop_body
      %s42 = ssub.s32 %s37, 1
      %s43 = ssub.s32 %s37, 2
      %s44 = sadd.s32 %s37, 1
      %s45 = sld [smem:[#allocation4 + %s37]]
      %s46 = sld [smem:[#allocation4 + %s44]]
      %s47 = ssub.s32 %s45, %s46
      %p48 = scmp.eq.s32.totalorder %s47, 0
      %s50 = sadd.s32 %s49, 1
      %s51 = scalar_select %p48, %s49, %s50
      %p54 = pneg %p48
      %p55 = scmp.eq.s32.totalorder %s37, 7
      %p56 = por %p54, %p55
      %p57 = scmp.ne.s32.totalorder %s49, %s52
      %p58 = scmp.eq.s32.totalorder %s37, 0
      %p59 = por %p57, %p58
      %p60 = scmp.ne.s32.totalorder %s49, %s52
      %p61 = scmp.eq.s32.totalorder %s42, 7
      %p62 = por %p60, %p61
      %p63 = scmp.ne.s32.totalorder %s52, %s53
      %p64 = scmp.eq.s32.totalorder %s42, 0
      %p65 = por %p63, %p64
      %p66 = scmp.ne.s32.totalorder %s52, %s53
      %p67 = scmp.eq.s32.totalorder %s43, 7
      %p68 = por %p66, %p67
      %p70 = scmp.ne.s32.totalorder %s53, %s69
      %p71 = scmp.eq.s32.totalorder %s43, 0
      %p72 = por %p70, %p71
      %s73 = sld [smem:[#allocation4 + %s37]]
      %s74 = sld [smem:[#allocation4 + %s44]]
      %s75 = ssub.s32 %s73, %s74
      %p76 = scmp.eq.s32.totalorder %s75, 0
      %s78 = sadd.s32 %s77, 1
      %s79 = scalar_select %p76, %s77, %s78
      %p82 = pneg %p76
      %p83 = scmp.eq.s32.totalorder %s37, 7
      %p84 = por %p82, %p83
      %p85 = scmp.ne.s32.totalorder %s77, %s80
      %p86 = scmp.eq.s32.totalorder %s37, 0
      %p87 = por %p85, %p86
      %p88 = scmp.ne.s32.totalorder %s77, %s80
      %p89 = scmp.eq.s32.totalorder %s42, 7
      %p90 = por %p88, %p89
      %p91 = scmp.ne.s32.totalorder %s80, %s81
      %p92 = scmp.eq.s32.totalorder %s42, 0
      %p93 = por %p91, %p92
      %p94 = scmp.ne.s32.totalorder %s80, %s81
      %p95 = scmp.eq.s32.totalorder %s43, 7
      %p96 = por %p94, %p95
      %p98 = scmp.ne.s32.totalorder %s81, %s97
      %p99 = scmp.eq.s32.totalorder %s43, 0
      %p100 = por %p98, %p99
      %s101 = sld [smem:[#allocation3 + %s37]]
      %s102 = sld [smem:[#allocation3 + %s44]]
      %s103 = ssub.s32 %s101, %s102
      %p104 = scmp.eq.s32.totalorder %s103, 0
      %s106 = sadd.s32 %s105, 1
      %s107 = scalar_select %p104, %s105, %s106
      %p110 = pneg %p104
      %p111 = scmp.eq.s32.totalorder %s37, 7
      %p112 = por %p110, %p111
      %p113 = scmp.ne.s32.totalorder %s105, %s108
      %p114 = scmp.eq.s32.totalorder %s37, 0
      %p115 = por %p113, %p114
      %p116 = scmp.ne.s32.totalorder %s105, %s108
      %p117 = scmp.eq.s32.totalorder %s42, 7
      %p118 = por %p116, %p117
      %p119 = scmp.ne.s32.totalorder %s108, %s109
      %p120 = scmp.eq.s32.totalorder %s42, 0
      %p121 = por %p119, %p120
      %p122 = scmp.ne.s32.totalorder %s108, %s109
      %p123 = scmp.eq.s32.totalorder %s43, 7
      %p124 = por %p122, %p123
      %p126 = scmp.ne.s32.totalorder %s109, %s125
      %p127 = scmp.eq.s32.totalorder %s43, 0
      %p128 = por %p126, %p127
      %p129 = scmp.le.s32.totalorder 1, %s37
      %p130 = scmp.lt.s32.totalorder %s37, 9
      %p131 = pnand %p129, %p130
      %p132 = pneg %p131
      // Predicated region
      $region9: #{tpu_custom_call.1} parent=5 // pred_check
        _
      $region10: #{tpu_custom_call.1} parent=5 // pred_check_branch
        %134 = sbr.rel (%p131) target = $region12
      $region11: #{tpu_custom_call.1} parent=5 // pred_region
        %s135 = ssub.s32 %s37, 1
      $region12: #{tpu_custom_call.1} parent=5 // pred_fallthru
        _
      %p136 = scmp.lt.s32.totalorder %s37, 8
      // Predicated region
      $region13: #{tpu_custom_call.1} parent=5 // pred_check
        %p137 = pneg %p136
      $region14: #{tpu_custom_call.1} parent=5 // pred_check_branch
        %139 = sbr.rel (%p137) target = $region16
      $region15: #{tpu_custom_call.1} parent=5 // pred_region
        // Predicated region
        $region17: #{tpu_custom_call.1} parent=15 // pred_check
          %p140 = pneg %p59
        $region18: #{tpu_custom_call.1} parent=15 // pred_check_branch
          %142 = sbr.rel (%p140) target = $region20
        $region19: #{tpu_custom_call.1} parent=15 // pred_region
          %s143 = sand.u32 %s49, 1
          %s144 = scalar_lea.sflag [#allocation8], %s143
          %s145 = sand.u32 %s49, 1
          %s146 = smul.addr %s145, 8
          %s147 = scalar_lea.vmem [#allocation7], %s146
          %s148 = sld [smem:[#allocation4 + %s37]]
          %s149 = smul.u32 8, %s148
          %s151 = ssub.s32 128, 128
          %152 = vsyncadd %s144, %s151
          %s153 = smul.addr %s149, 16
          %s154 = scalar_lea.hbm %s4, %s153
          %s156 = sshll.u32 %s147, 4
          %s157 = int_to_ptr.vmem [resolvable:$true] %s156
          %159 = dma.hbm_to_vmem [thread:$0]  %s154, 128, %s157, %s144
        $region20: #{tpu_custom_call.1} parent=15 // pred_fallthru
          _
        // Predicated region
        $region21: #{tpu_custom_call.1} parent=15 // pred_check
          %p160 = pneg %p87
        $region22: #{tpu_custom_call.1} parent=15 // pred_check_branch
          %162 = sbr.rel (%p160) target = $region24
        $region23: #{tpu_custom_call.1} parent=15 // pred_region
          %s163 = sand.u32 %s77, 1
          %s164 = scalar_lea.sflag [#allocation11], %s163
          %s165 = sand.u32 %s77, 1
          %s166 = smul.addr %s165, 64
          %s167 = scalar_lea.vmem [#allocation10], %s166
          %s168 = sld [smem:[#allocation4 + %s37]]
          %s169 = smul.u32 8, %s168
          %s171 = ssub.s32 1024, 1024
          %172 = vsyncadd %s164, %s171
          %s173 = smul.addr %s169, 128
          %s174 = scalar_lea.hbm %s5, %s173
          %s176 = sshll.u32 %s167, 4
          %s177 = int_to_ptr.vmem [resolvable:$true] %s176
          %179 = dma.hbm_to_vmem [thread:$0]  %s174, 1024, %s177, %s164
        $region24: #{tpu_custom_call.1} parent=15 // pred_fallthru
          _
      $region16: #{tpu_custom_call.1} parent=5 // pred_fallthru
        _
      %p180 = scmp.le.s32.totalorder 1, %s37
      %p181 = scmp.lt.s32.totalorder %s37, 9
      %p182 = pnand %p180, %p181
      %p183 = pneg %p182
      // Predicated region
      $region25: #{tpu_custom_call.1} parent=5 // pred_check
        _
      $region26: #{tpu_custom_call.1} parent=5 // pred_check_branch
        %185 = sbr.rel (%p182) target = $region28
      $region27: #{tpu_custom_call.1} parent=5 // pred_region
        %s186 = ssub.s32 %s37, 1
        %s187 = sand.u32 %s52, 1
        %s188 = scalar_lea.sflag [#allocation8], %s187
        %s189 = sand.u32 %s52, 1
        %s190 = smul.addr %s189, 8
        %s191 = scalar_lea.vmem [#allocation7], %s190
        // Predicated region
        $region29: #{tpu_custom_call.1} parent=27 // pred_check
          %p192 = pneg %p65
        $region30: #{tpu_custom_call.1} parent=27 // pred_check_branch
          %194 = sbr.rel (%p192) target = $region32
        $region31: #{tpu_custom_call.1} parent=27 // pred_region
          %195 = dma.done %s188, 128
        $region32: #{tpu_custom_call.1} parent=27 // pred_fallthru
          _
        %s196 = sand.u32 %s80, 1
        %s197 = scalar_lea.sflag [#allocation11], %s196
        %s198 = sand.u32 %s80, 1
        %s199 = smul.addr %s198, 64
        %s200 = scalar_lea.vmem [#allocation10], %s199
        // Predicated region
        $region33: #{tpu_custom_call.1} parent=27 // pred_check
          %p201 = pneg %p93
        $region34: #{tpu_custom_call.1} parent=27 // pred_check_branch
          %203 = sbr.rel (%p201) target = $region36
        $region35: #{tpu_custom_call.1} parent=27 // pred_region
          %204 = dma.done %s197, 1024
        $region36: #{tpu_custom_call.1} parent=27 // pred_fallthru
          _
        %s205 = sand.u32 %s52, 1
        %s206 = scalar_lea.sflag [#allocation8], %s205
        %s207 = sand.u32 %s52, 1
        %s208 = smul.addr %s207, 8
        %s209 = scalar_lea.vmem [#allocation7], %s208
        %p210 = pneg %p65
        %p211 = pneg %p62
        %s212 = sand.u32 %s80, 1
        %s213 = scalar_lea.sflag [#allocation11], %s212
        %s214 = sand.u32 %s80, 1
        %s215 = smul.addr %s214, 64
        %s216 = scalar_lea.vmem [#allocation10], %s215
        %p217 = pneg %p93
        %p218 = pneg %p90
        %p219 = pneg %p121
        %p220 = pneg %p118
        %s221 = sand.u32 %s108, 1
        %s222 = scalar_lea.sflag [#allocation9], %s221
        %s223 = sand.u32 %s108, 1
        %s224 = smul.addr %s223, 16
        %s225 = scalar_lea.vmem [#allocation12], %s224
        %s226 = sld [smem:[#allocation4 + %s42]]
        %s227 = smul.u32 8, %s226
        %s228 = sld [smem:[#allocation4 + %s42]]
        %s229 = smul.u32 8, %s228
        %s230 = sld [smem:[#allocation3 + %s42]]
        %s231 = smul.u32 2, %s230
        %s232 = sld [smem:[#allocation5 + %s42]]
        %p233 = scmp.eq.s32.totalorder %s232, 1
        // Predicated region
        $region37: #{tpu_custom_call.1} parent=27 // pred_check
          %p234 = pneg %p233
        $region38: #{tpu_custom_call.1} parent=27 // pred_check_branch
          %236 = sbr.rel (%p234) target = $region40
        $region39: #{tpu_custom_call.1} parent=27 // pred_region
          %237 = vst [vmem:[%s225] sm:$0xff] 0.0
          %238 = vst [vmem:[%s225 + $0x8] sm:$0xff] 0.0
        $region40: #{tpu_custom_call.1} parent=27 // pred_fallthru
          _
        %s239 = sld [smem:[#allocation6 + %s42]]
        %p240 = scmp.eq.s32.totalorder %s239, 1
        // Predicated region
        $region41: #{tpu_custom_call.1} parent=27 // pred_check
          %p241 = pneg %p240
        $region42: #{tpu_custom_call.1} parent=27 // pred_check_branch
          %243 = sbr.rel (%p241) target = $region44
        $region43: #{tpu_custom_call.1} parent=27 // pred_region
          %v244 = vld [vmem:[%s191] sm:$0xff]
          %s245 = sld [smem:[#allocation3 + %s42]]
          %s246 = smul.u32 %s245, 256
          %v247 = vlaneseq
          %v248 = vshrl.u32 %v247, 7
          %v249 = vadd.s32 %v248, 8
          %v250 = vadd.s32 %v248, 16
          %v251 = vadd.s32 %v248, 24
          %v252 = vadd.s32 %v248, 32
          %v253 = vadd.s32 %v248, 40
          %v254 = vadd.s32 %v248, 48
          %v255 = vadd.s32 %v248, 56
          %v256 = vadd.s32 %v248, 64
          %v257 = vadd.s32 %v248, 72
          %v258 = vadd.s32 %v248, 80
          %v259 = vadd.s32 %v248, 88
          %v260 = vadd.s32 %v248, 96
          %v261 = vadd.s32 %v248, 104
          %v262 = vadd.s32 %v248, 112
          %v263 = vadd.s32 %v248, 120
          %v264 = vadd.s32 %v248, 128
          %v265 = vadd.s32 %v248, 136
          %v266 = vadd.s32 %v248, 144
          %v267 = vadd.s32 %v248, 152
          %v268 = vadd.s32 %v248, 160
          %v269 = vadd.s32 %v248, 168
          %v270 = vadd.s32 %v248, 176
          %v271 = vadd.s32 %v248, 184
          %v272 = vadd.s32 %v248, 192
          %v273 = vadd.s32 %v248, 200
          %v274 = vadd.s32 %v248, 208
          %v275 = vadd.s32 %v248, 216
          %v276 = vadd.s32 %v248, 224
          %v277 = vadd.s32 %v248, 232
          %v278 = vadd.s32 %v248, 240
          %v279 = vadd.s32 %v248, 248
          %v280 = vstv %s246
          %v281 = vadd.s32 %v280, %v248
          %v282 = vadd.s32 %v280, %v249
          %v283 = vadd.s32 %v280, %v250
          %v284 = vadd.s32 %v280, %v251
          %v285 = vadd.s32 %v280, %v252
          %v286 = vadd.s32 %v280, %v253
          %v287 = vadd.s32 %v280, %v254
          %v288 = vadd.s32 %v280, %v255
          %v289 = vadd.s32 %v280, %v256
          %v290 = vadd.s32 %v280, %v257
          %v291 = vadd.s32 %v280, %v258
          %v292 = vadd.s32 %v280, %v259
          %v293 = vadd.s32 %v280, %v260
          %v294 = vadd.s32 %v280, %v261
          %v295 = vadd.s32 %v280, %v262
          %v296 = vadd.s32 %v280, %v263
          %v297 = vadd.s32 %v280, %v264
          %v298 = vadd.s32 %v280, %v265
          %v299 = vadd.s32 %v280, %v266
          %v300 = vadd.s32 %v280, %v267
          %v301 = vadd.s32 %v280, %v268
          %v302 = vadd.s32 %v280, %v269
          %v303 = vadd.s32 %v280, %v270
          %v304 = vadd.s32 %v280, %v271
          %v305 = vadd.s32 %v280, %v272
          %v306 = vadd.s32 %v280, %v273
          %v307 = vadd.s32 %v280, %v274
          %v308 = vadd.s32 %v280, %v275
          %v309 = vadd.s32 %v280, %v276
          %v310 = vadd.s32 %v280, %v277
          %v311 = vadd.s32 %v280, %v278
          %v312 = vadd.s32 %v280, %v279
          %v313 = vlaneseq
          %v314 = vshrl.u32 %v313, 7
          %v315 = vsub.s32 0, %v314
          %v316 = vrot.slane %v244, %v315
          %v317 = vlaneseq
          %v318 = vshrl.u32 %v317, 7
          %v319 = vsub.s32 1, %v318
          %v320 = vrot.slane %v244, %v319
          %v321 = vlaneseq
          %v322 = vshrl.u32 %v321, 7
          %v323 = vsub.s32 2, %v322
          %v324 = vrot.slane %v244, %v323
          %v325 = vlaneseq
          %v326 = vshrl.u32 %v325, 7
          %v327 = vsub.s32 3, %v326
          %v328 = vrot.slane %v244, %v327
          %v329 = vlaneseq
          %v330 = vshrl.u32 %v329, 7
          %v331 = vsub.s32 4, %v330
          %v332 = vrot.slane %v244, %v331
          %v333 = vlaneseq
          %v334 = vshrl.u32 %v333, 7
          %v335 = vsub.s32 5, %v334
          %v336 = vrot.slane %v244, %v335
          %v337 = vlaneseq
          %v338 = vshrl.u32 %v337, 7
          %v339 = vsub.s32 6, %v338
          %v340 = vrot.slane %v244, %v339
          %v341 = vlaneseq
          %v342 = vshrl.u32 %v341, 7
          %v343 = vsub.s32 7, %v342
          %v344 = vrot.slane %v244, %v343
          %vm345 = vcmp.eq.s32.totalorder %v316, %v281
          %vm346 = vcmp.eq.s32.totalorder %v320, %v281
          %vm347 = vcmp.eq.s32.totalorder %v324, %v281
          %vm348 = vcmp.eq.s32.totalorder %v328, %v281
          %vm349 = vcmp.eq.s32.totalorder %v332, %v281
          %vm350 = vcmp.eq.s32.totalorder %v336, %v281
          %vm351 = vcmp.eq.s32.totalorder %v340, %v281
          %vm352 = vcmp.eq.s32.totalorder %v344, %v281
          %vm353 = vcmp.eq.s32.totalorder %v316, %v282
          %vm354 = vcmp.eq.s32.totalorder %v320, %v282
          %vm355 = vcmp.eq.s32.totalorder %v324, %v282
          %vm356 = vcmp.eq.s32.totalorder %v328, %v282
          %vm357 = vcmp.eq.s32.totalorder %v332, %v282
          %vm358 = vcmp.eq.s32.totalorder %v336, %v282
          %vm359 = vcmp.eq.s32.totalorder %v340, %v282
          %vm360 = vcmp.eq.s32.totalorder %v344, %v282
          %vm361 = vcmp.eq.s32.totalorder %v316, %v283
          %vm362 = vcmp.eq.s32.totalorder %v320, %v283
          %vm363 = vcmp.eq.s32.totalorder %v324, %v283
          %vm364 = vcmp.eq.s32.totalorder %v328, %v283
          %vm365 = vcmp.eq.s32.totalorder %v332, %v283
          %vm366 = vcmp.eq.s32.totalorder %v336, %v283
          %vm367 = vcmp.eq.s32.totalorder %v340, %v283
          %vm368 = vcmp.eq.s32.totalorder %v344, %v283
          %vm369 = vcmp.eq.s32.totalorder %v316, %v284
          %vm370 = vcmp.eq.s32.totalorder %v320, %v284
          %vm371 = vcmp.eq.s32.totalorder %v324, %v284
          %vm372 = vcmp.eq.s32.totalorder %v328, %v284
          %vm373 = vcmp.eq.s32.totalorder %v332, %v284
          %vm374 = vcmp.eq.s32.totalorder %v336, %v284
          %vm375 = vcmp.eq.s32.totalorder %v340, %v284
          %vm376 = vcmp.eq.s32.totalorder %v344, %v284
          %vm377 = vcmp.eq.s32.totalorder %v316, %v285
          %vm378 = vcmp.eq.s32.totalorder %v320, %v285
          %vm379 = vcmp.eq.s32.totalorder %v324, %v285
          %vm380 = vcmp.eq.s32.totalorder %v328, %v285
          %vm381 = vcmp.eq.s32.totalorder %v332, %v285
          %vm382 = vcmp.eq.s32.totalorder %v336, %v285
          %vm383 = vcmp.eq.s32.totalorder %v340, %v285
          %vm384 = vcmp.eq.s32.totalorder %v344, %v285
          %vm385 = vcmp.eq.s32.totalorder %v316, %v286
          %vm386 = vcmp.eq.s32.totalorder %v320, %v286
          %vm387 = vcmp.eq.s32.totalorder %v324, %v286
          %vm388 = vcmp.eq.s32.totalorder %v328, %v286
          %vm389 = vcmp.eq.s32.totalorder %v332, %v286
          %vm390 = vcmp.eq.s32.totalorder %v336, %v286
          %vm391 = vcmp.eq.s32.totalorder %v340, %v286
          %vm392 = vcmp.eq.s32.totalorder %v344, %v286
          %vm393 = vcmp.eq.s32.totalorder %v316, %v287
          %vm394 = vcmp.eq.s32.totalorder %v320, %v287
          %vm395 = vcmp.eq.s32.totalorder %v324, %v287
          %vm396 = vcmp.eq.s32.totalorder %v328, %v287
          %vm397 = vcmp.eq.s32.totalorder %v332, %v287
          %vm398 = vcmp.eq.s32.totalorder %v336, %v287
          %vm399 = vcmp.eq.s32.totalorder %v340, %v287
          %vm400 = vcmp.eq.s32.totalorder %v344, %v287
          %vm401 = vcmp.eq.s32.totalorder %v316, %v288
          %vm402 = vcmp.eq.s32.totalorder %v320, %v288
          %vm403 = vcmp.eq.s32.totalorder %v324, %v288
          %vm404 = vcmp.eq.s32.totalorder %v328, %v288
          %vm405 = vcmp.eq.s32.totalorder %v332, %v288
          %vm406 = vcmp.eq.s32.totalorder %v336, %v288
          %vm407 = vcmp.eq.s32.totalorder %v340, %v288
          %vm408 = vcmp.eq.s32.totalorder %v344, %v288
          %vm409 = vcmp.eq.s32.totalorder %v316, %v289
          %vm410 = vcmp.eq.s32.totalorder %v320, %v289
          %vm411 = vcmp.eq.s32.totalorder %v324, %v289
          %vm412 = vcmp.eq.s32.totalorder %v328, %v289
          %vm413 = vcmp.eq.s32.totalorder %v332, %v289
          %vm414 = vcmp.eq.s32.totalorder %v336, %v289
          %vm415 = vcmp.eq.s32.totalorder %v340, %v289
          %vm416 = vcmp.eq.s32.totalorder %v344, %v289
          %vm417 = vcmp.eq.s32.totalorder %v316, %v290
          %vm418 = vcmp.eq.s32.totalorder %v320, %v290
          %vm419 = vcmp.eq.s32.totalorder %v324, %v290
          %vm420 = vcmp.eq.s32.totalorder %v328, %v290
          %vm421 = vcmp.eq.s32.totalorder %v332, %v290
          %vm422 = vcmp.eq.s32.totalorder %v336, %v290
          %vm423 = vcmp.eq.s32.totalorder %v340, %v290
          %vm424 = vcmp.eq.s32.totalorder %v344, %v290
          %vm425 = vcmp.eq.s32.totalorder %v316, %v291
          %vm426 = vcmp.eq.s32.totalorder %v320, %v291
          %vm427 = vcmp.eq.s32.totalorder %v324, %v291
          %vm428 = vcmp.eq.s32.totalorder %v328, %v291
          %vm429 = vcmp.eq.s32.totalorder %v332, %v291
          %vm430 = vcmp.eq.s32.totalorder %v336, %v291
          %vm431 = vcmp.eq.s32.totalorder %v340, %v291
          %vm432 = vcmp.eq.s32.totalorder %v344, %v291
          %vm433 = vcmp.eq.s32.totalorder %v316, %v292
          %vm434 = vcmp.eq.s32.totalorder %v320, %v292
          %vm435 = vcmp.eq.s32.totalorder %v324, %v292
          %vm436 = vcmp.eq.s32.totalorder %v328, %v292
          %vm437 = vcmp.eq.s32.totalorder %v332, %v292
          %vm438 = vcmp.eq.s32.totalorder %v336, %v292
          %vm439 = vcmp.eq.s32.totalorder %v340, %v292
          %vm440 = vcmp.eq.s32.totalorder %v344, %v292
          %vm441 = vcmp.eq.s32.totalorder %v316, %v293
          %vm442 = vcmp.eq.s32.totalorder %v320, %v293
          %vm443 = vcmp.eq.s32.totalorder %v324, %v293
          %vm444 = vcmp.eq.s32.totalorder %v328, %v293
          %vm445 = vcmp.eq.s32.totalorder %v332, %v293
          %vm446 = vcmp.eq.s32.totalorder %v336, %v293
          %vm447 = vcmp.eq.s32.totalorder %v340, %v293
          %vm448 = vcmp.eq.s32.totalorder %v344, %v293
          %vm449 = vcmp.eq.s32.totalorder %v316, %v294
          %vm450 = vcmp.eq.s32.totalorder %v320, %v294
          %vm451 = vcmp.eq.s32.totalorder %v324, %v294
          %vm452 = vcmp.eq.s32.totalorder %v328, %v294
          %vm453 = vcmp.eq.s32.totalorder %v332, %v294
          %vm454 = vcmp.eq.s32.totalorder %v336, %v294
          %vm455 = vcmp.eq.s32.totalorder %v340, %v294
          %vm456 = vcmp.eq.s32.totalorder %v344, %v294
          %vm457 = vcmp.eq.s32.totalorder %v316, %v295
          %vm458 = vcmp.eq.s32.totalorder %v320, %v295
          %vm459 = vcmp.eq.s32.totalorder %v324, %v295
          %vm460 = vcmp.eq.s32.totalorder %v328, %v295
          %vm461 = vcmp.eq.s32.totalorder %v332, %v295
          %vm462 = vcmp.eq.s32.totalorder %v336, %v295
          %vm463 = vcmp.eq.s32.totalorder %v340, %v295
          %vm464 = vcmp.eq.s32.totalorder %v344, %v295
          %vm465 = vcmp.eq.s32.totalorder %v316, %v296
          %vm466 = vcmp.eq.s32.totalorder %v320, %v296
          %vm467 = vcmp.eq.s32.totalorder %v324, %v296
          %vm468 = vcmp.eq.s32.totalorder %v328, %v296
          %vm469 = vcmp.eq.s32.totalorder %v332, %v296
          %vm470 = vcmp.eq.s32.totalorder %v336, %v296
          %vm471 = vcmp.eq.s32.totalorder %v340, %v296
          %vm472 = vcmp.eq.s32.totalorder %v344, %v296
          %vm473 = vcmp.eq.s32.totalorder %v316, %v297
          %vm474 = vcmp.eq.s32.totalorder %v320, %v297
          %vm475 = vcmp.eq.s32.totalorder %v324, %v297
          %vm476 = vcmp.eq.s32.totalorder %v328, %v297
          %vm477 = vcmp.eq.s32.totalorder %v332, %v297
          %vm478 = vcmp.eq.s32.totalorder %v336, %v297
          %vm479 = vcmp.eq.s32.totalorder %v340, %v297
          %vm480 = vcmp.eq.s32.totalorder %v344, %v297
          %vm481 = vcmp.eq.s32.totalorder %v316, %v298
          %vm482 = vcmp.eq.s32.totalorder %v320, %v298
          %vm483 = vcmp.eq.s32.totalorder %v324, %v298
          %vm484 = vcmp.eq.s32.totalorder %v328, %v298
          %vm485 = vcmp.eq.s32.totalorder %v332, %v298
          %vm486 = vcmp.eq.s32.totalorder %v336, %v298
          %vm487 = vcmp.eq.s32.totalorder %v340, %v298
          %vm488 = vcmp.eq.s32.totalorder %v344, %v298
          %vm489 = vcmp.eq.s32.totalorder %v316, %v299
          %vm490 = vcmp.eq.s32.totalorder %v320, %v299
          %vm491 = vcmp.eq.s32.totalorder %v324, %v299
          %vm492 = vcmp.eq.s32.totalorder %v328, %v299
          %vm493 = vcmp.eq.s32.totalorder %v332, %v299
          %vm494 = vcmp.eq.s32.totalorder %v336, %v299
          %vm495 = vcmp.eq.s32.totalorder %v340, %v299
          %vm496 = vcmp.eq.s32.totalorder %v344, %v299
          %vm497 = vcmp.eq.s32.totalorder %v316, %v300
          %vm498 = vcmp.eq.s32.totalorder %v320, %v300
          %vm499 = vcmp.eq.s32.totalorder %v324, %v300
          %vm500 = vcmp.eq.s32.totalorder %v328, %v300
          %vm501 = vcmp.eq.s32.totalorder %v332, %v300
          %vm502 = vcmp.eq.s32.totalorder %v336, %v300
          %vm503 = vcmp.eq.s32.totalorder %v340, %v300
          %vm504 = vcmp.eq.s32.totalorder %v344, %v300
          %vm505 = vcmp.eq.s32.totalorder %v316, %v301
          %vm506 = vcmp.eq.s32.totalorder %v320, %v301
          %vm507 = vcmp.eq.s32.totalorder %v324, %v301
          %vm508 = vcmp.eq.s32.totalorder %v328, %v301
          %vm509 = vcmp.eq.s32.totalorder %v332, %v301
          %vm510 = vcmp.eq.s32.totalorder %v336, %v301
          %vm511 = vcmp.eq.s32.totalorder %v340, %v301
          %vm512 = vcmp.eq.s32.totalorder %v344, %v301
          %vm513 = vcmp.eq.s32.totalorder %v316, %v302
          %vm514 = vcmp.eq.s32.totalorder %v320, %v302
          %vm515 = vcmp.eq.s32.totalorder %v324, %v302
          %vm516 = vcmp.eq.s32.totalorder %v328, %v302
          %vm517 = vcmp.eq.s32.totalorder %v332, %v302
          %vm518 = vcmp.eq.s32.totalorder %v336, %v302
          %vm519 = vcmp.eq.s32.totalorder %v340, %v302
          %vm520 = vcmp.eq.s32.totalorder %v344, %v302
          %vm521 = vcmp.eq.s32.totalorder %v316, %v303
          %vm522 = vcmp.eq.s32.totalorder %v320, %v303
          %vm523 = vcmp.eq.s32.totalorder %v324, %v303
          %vm524 = vcmp.eq.s32.totalorder %v328, %v303
          %vm525 = vcmp.eq.s32.totalorder %v332, %v303
          %vm526 = vcmp.eq.s32.totalorder %v336, %v303
          %vm527 = vcmp.eq.s32.totalorder %v340, %v303
          %vm528 = vcmp.eq.s32.totalorder %v344, %v303
          %vm529 = vcmp.eq.s32.totalorder %v316, %v304
          %vm530 = vcmp.eq.s32.totalorder %v320, %v304
          %vm531 = vcmp.eq.s32.totalorder %v324, %v304
          %vm532 = vcmp.eq.s32.totalorder %v328, %v304
          %vm533 = vcmp.eq.s32.totalorder %v332, %v304
          %vm534 = vcmp.eq.s32.totalorder %v336, %v304
          %vm535 = vcmp.eq.s32.totalorder %v340, %v304
          %vm536 = vcmp.eq.s32.totalorder %v344, %v304
          %vm537 = vcmp.eq.s32.totalorder %v316, %v305
          %vm538 = vcmp.eq.s32.totalorder %v320, %v305
          %vm539 = vcmp.eq.s32.totalorder %v324, %v305
          %vm540 = vcmp.eq.s32.totalorder %v328, %v305
          %vm541 = vcmp.eq.s32.totalorder %v332, %v305
          %vm542 = vcmp.eq.s32.totalorder %v336, %v305
          %vm543 = vcmp.eq.s32.totalorder %v340, %v305
          %vm544 = vcmp.eq.s32.totalorder %v344, %v305
          %vm545 = vcmp.eq.s32.totalorder %v316, %v306
          %vm546 = vcmp.eq.s32.totalorder %v320, %v306
          %vm547 = vcmp.eq.s32.totalorder %v324, %v306
          %vm548 = vcmp.eq.s32.totalorder %v328, %v306
          %vm549 = vcmp.eq.s32.totalorder %v332, %v306
          %vm550 = vcmp.eq.s32.totalorder %v336, %v306
          %vm551 = vcmp.eq.s32.totalorder %v340, %v306
          %vm552 = vcmp.eq.s32.totalorder %v344, %v306
          %vm553 = vcmp.eq.s32.totalorder %v316, %v307
          %vm554 = vcmp.eq.s32.totalorder %v320, %v307
          %vm555 = vcmp.eq.s32.totalorder %v324, %v307
          %vm556 = vcmp.eq.s32.totalorder %v328, %v307
          %vm557 = vcmp.eq.s32.totalorder %v332, %v307
          %vm558 = vcmp.eq.s32.totalorder %v336, %v307
          %vm559 = vcmp.eq.s32.totalorder %v340, %v307
          %vm560 = vcmp.eq.s32.totalorder %v344, %v307
          %vm561 = vcmp.eq.s32.totalorder %v316, %v308
          %vm562 = vcmp.eq.s32.totalorder %v320, %v308
          %vm563 = vcmp.eq.s32.totalorder %v324, %v308
          %vm564 = vcmp.eq.s32.totalorder %v328, %v308
          %vm565 = vcmp.eq.s32.totalorder %v332, %v308
          %vm566 = vcmp.eq.s32.totalorder %v336, %v308
          %vm567 = vcmp.eq.s32.totalorder %v340, %v308
          %vm568 = vcmp.eq.s32.totalorder %v344, %v308
          %vm569 = vcmp.eq.s32.totalorder %v316, %v309
          %vm570 = vcmp.eq.s32.totalorder %v320, %v309
          %vm571 = vcmp.eq.s32.totalorder %v324, %v309
          %vm572 = vcmp.eq.s32.totalorder %v328, %v309
          %vm573 = vcmp.eq.s32.totalorder %v332, %v309
          %vm574 = vcmp.eq.s32.totalorder %v336, %v309
          %vm575 = vcmp.eq.s32.totalorder %v340, %v309
          %vm576 = vcmp.eq.s32.totalorder %v344, %v309
          %vm577 = vcmp.eq.s32.totalorder %v316, %v310
          %vm578 = vcmp.eq.s32.totalorder %v320, %v310
          %vm579 = vcmp.eq.s32.totalorder %v324, %v310
          %vm580 = vcmp.eq.s32.totalorder %v328, %v310
          %vm581 = vcmp.eq.s32.totalorder %v332, %v310
          %vm582 = vcmp.eq.s32.totalorder %v336, %v310
          %vm583 = vcmp.eq.s32.totalorder %v340, %v310
          %vm584 = vcmp.eq.s32.totalorder %v344, %v310
          %vm585 = vcmp.eq.s32.totalorder %v316, %v311
          %vm586 = vcmp.eq.s32.totalorder %v320, %v311
          %vm587 = vcmp.eq.s32.totalorder %v324, %v311
          %vm588 = vcmp.eq.s32.totalorder %v328, %v311
          %vm589 = vcmp.eq.s32.totalorder %v332, %v311
          %vm590 = vcmp.eq.s32.totalorder %v336, %v311
          %vm591 = vcmp.eq.s32.totalorder %v340, %v311
          %vm592 = vcmp.eq.s32.totalorder %v344, %v311
          %vm593 = vcmp.eq.s32.totalorder %v316, %v312
          %vm594 = vcmp.eq.s32.totalorder %v320, %v312
          %vm595 = vcmp.eq.s32.totalorder %v324, %v312
          %vm596 = vcmp.eq.s32.totalorder %v328, %v312
          %vm597 = vcmp.eq.s32.totalorder %v332, %v312
          %vm598 = vcmp.eq.s32.totalorder %v336, %v312
          %vm599 = vcmp.eq.s32.totalorder %v340, %v312
          %vm600 = vcmp.eq.s32.totalorder %v344, %v312
          %v601 = vsel %vm345, 1, 0
          %v602 = vsel %vm346, 1, 0
          %v603 = vsel %vm347, 1, 0
          %v604 = vsel %vm348, 1, 0
          %v605 = vsel %vm349, 1, 0
          %v606 = vsel %vm350, 1, 0
          %v607 = vsel %vm351, 1, 0
          %v608 = vsel %vm352, 1, 0
          %v609 = vsel %vm353, 1, 0
          %v610 = vsel %vm354, 1, 0
          %v611 = vsel %vm355, 1, 0
          %v612 = vsel %vm356, 1, 0
          %v613 = vsel %vm357, 1, 0
          %v614 = vsel %vm358, 1, 0
          %v615 = vsel %vm359, 1, 0
          %v616 = vsel %vm360, 1, 0
          %v617 = vsel %vm361, 1, 0
          %v618 = vsel %vm362, 1, 0
          %v619 = vsel %vm363, 1, 0
          %v620 = vsel %vm364, 1, 0
          %v621 = vsel %vm365, 1, 0
          %v622 = vsel %vm366, 1, 0
          %v623 = vsel %vm367, 1, 0
          %v624 = vsel %vm368, 1, 0
          %v625 = vsel %vm369, 1, 0
          %v626 = vsel %vm370, 1, 0
          %v627 = vsel %vm371, 1, 0
          %v628 = vsel %vm372, 1, 0
          %v629 = vsel %vm373, 1, 0
          %v630 = vsel %vm374, 1, 0
          %v631 = vsel %vm375, 1, 0
          %v632 = vsel %vm376, 1, 0
          %v633 = vsel %vm377, 1, 0
          %v634 = vsel %vm378, 1, 0
          %v635 = vsel %vm379, 1, 0
          %v636 = vsel %vm380, 1, 0
          %v637 = vsel %vm381, 1, 0
          %v638 = vsel %vm382, 1, 0
          %v639 = vsel %vm383, 1, 0
          %v640 = vsel %vm384, 1, 0
          %v641 = vsel %vm385, 1, 0
          %v642 = vsel %vm386, 1, 0
          %v643 = vsel %vm387, 1, 0
          %v644 = vsel %vm388, 1, 0
          %v645 = vsel %vm389, 1, 0
          %v646 = vsel %vm390, 1, 0
          %v647 = vsel %vm391, 1, 0
          %v648 = vsel %vm392, 1, 0
          %v649 = vsel %vm393, 1, 0
          %v650 = vsel %vm394, 1, 0
          %v651 = vsel %vm395, 1, 0
          %v652 = vsel %vm396, 1, 0
          %v653 = vsel %vm397, 1, 0
          %v654 = vsel %vm398, 1, 0
          %v655 = vsel %vm399, 1, 0
          %v656 = vsel %vm400, 1, 0
          %v657 = vsel %vm401, 1, 0
          %v658 = vsel %vm402, 1, 0
          %v659 = vsel %vm403, 1, 0
          %v660 = vsel %vm404, 1, 0
          %v661 = vsel %vm405, 1, 0
          %v662 = vsel %vm406, 1, 0
          %v663 = vsel %vm407, 1, 0
          %v664 = vsel %vm408, 1, 0
          %v665 = vsel %vm409, 1, 0
          %v666 = vsel %vm410, 1, 0
          %v667 = vsel %vm411, 1, 0
          %v668 = vsel %vm412, 1, 0
          %v669 = vsel %vm413, 1, 0
          %v670 = vsel %vm414, 1, 0
          %v671 = vsel %vm415, 1, 0
          %v672 = vsel %vm416, 1, 0
          %v673 = vsel %vm417, 1, 0
          %v674 = vsel %vm418, 1, 0
          %v675 = vsel %vm419, 1, 0
          %v676 = vsel %vm420, 1, 0
          %v677 = vsel %vm421, 1, 0
          %v678 = vsel %vm422, 1, 0
          %v679 = vsel %vm423, 1, 0
          %v680 = vsel %vm424, 1, 0
          %v681 = vsel %vm425, 1, 0
          %v682 = vsel %vm426, 1, 0
          %v683 = vsel %vm427, 1, 0
          %v684 = vsel %vm428, 1, 0
          %v685 = vsel %vm429, 1, 0
          %v686 = vsel %vm430, 1, 0
          %v687 = vsel %vm431, 1, 0
          %v688 = vsel %vm432, 1, 0
          %v689 = vsel %vm433, 1, 0
          %v690 = vsel %vm434, 1, 0
          %v691 = vsel %vm435, 1, 0
          %v692 = vsel %vm436, 1, 0
          %v693 = vsel %vm437, 1, 0
          %v694 = vsel %vm438, 1, 0
          %v695 = vsel %vm439, 1, 0
          %v696 = vsel %vm440, 1, 0
          %v697 = vsel %vm441, 1, 0
          %v698 = vsel %vm442, 1, 0
          %v699 = vsel %vm443, 1, 0
          %v700 = vsel %vm444, 1, 0
          %v701 = vsel %vm445, 1, 0
          %v702 = vsel %vm446, 1, 0
          %v703 = vsel %vm447, 1, 0
          %v704 = vsel %vm448, 1, 0
          %v705 = vsel %vm449, 1, 0
          %v706 = vsel %vm450, 1, 0
          %v707 = vsel %vm451, 1, 0
          %v708 = vsel %vm452, 1, 0
          %v709 = vsel %vm453, 1, 0
          %v710 = vsel %vm454, 1, 0
          %v711 = vsel %vm455, 1, 0
          %v712 = vsel %vm456, 1, 0
          %v713 = vsel %vm457, 1, 0
          %v714 = vsel %vm458, 1, 0
          %v715 = vsel %vm459, 1, 0
          %v716 = vsel %vm460, 1, 0
          %v717 = vsel %vm461, 1, 0
          %v718 = vsel %vm462, 1, 0
          %v719 = vsel %vm463, 1, 0
          %v720 = vsel %vm464, 1, 0
          %v721 = vsel %vm465, 1, 0
          %v722 = vsel %vm466, 1, 0
          %v723 = vsel %vm467, 1, 0
          %v724 = vsel %vm468, 1, 0
          %v725 = vsel %vm469, 1, 0
          %v726 = vsel %vm470, 1, 0
          %v727 = vsel %vm471, 1, 0
          %v728 = vsel %vm472, 1, 0
          %v729 = vsel %vm473, 1, 0
          %v730 = vsel %vm474, 1, 0
          %v731 = vsel %vm475, 1, 0
          %v732 = vsel %vm476, 1, 0
          %v733 = vsel %vm477, 1, 0
          %v734 = vsel %vm478, 1, 0
          %v735 = vsel %vm479, 1, 0
          %v736 = vsel %vm480, 1, 0
          %v737 = vsel %vm481, 1, 0
          %v738 = vsel %vm482, 1, 0
          %v739 = vsel %vm483, 1, 0
          %v740 = vsel %vm484, 1, 0
          %v741 = vsel %vm485, 1, 0
          %v742 = vsel %vm486, 1, 0
          %v743 = vsel %vm487, 1, 0
          %v744 = vsel %vm488, 1, 0
          %v745 = vsel %vm489, 1, 0
          %v746 = vsel %vm490, 1, 0
          %v747 = vsel %vm491, 1, 0
          %v748 = vsel %vm492, 1, 0
          %v749 = vsel %vm493, 1, 0
          %v750 = vsel %vm494, 1, 0
          %v751 = vsel %vm495, 1, 0
          %v752 = vsel %vm496, 1, 0
          %v753 = vsel %vm497, 1, 0
          %v754 = vsel %vm498, 1, 0
          %v755 = vsel %vm499, 1, 0
          %v756 = vsel %vm500, 1, 0
          %v757 = vsel %vm501, 1, 0
          %v758 = vsel %vm502, 1, 0
          %v759 = vsel %vm503, 1, 0
          %v760 = vsel %vm504, 1, 0
          %v761 = vsel %vm505, 1, 0
          %v762 = vsel %vm506, 1, 0
          %v763 = vsel %vm507, 1, 0
          %v764 = vsel %vm508, 1, 0
          %v765 = vsel %vm509, 1, 0
          %v766 = vsel %vm510, 1, 0
          %v767 = vsel %vm511, 1, 0
          %v768 = vsel %vm512, 1, 0
          %v769 = vsel %vm513, 1, 0
          %v770 = vsel %vm514, 1, 0
          %v771 = vsel %vm515, 1, 0
          %v772 = vsel %vm516, 1, 0
          %v773 = vsel %vm517, 1, 0
          %v774 = vsel %vm518, 1, 0
          %v775 = vsel %vm519, 1, 0
          %v776 = vsel %vm520, 1, 0
          %v777 = vsel %vm521, 1, 0
          %v778 = vsel %vm522, 1, 0
          %v779 = vsel %vm523, 1, 0
          %v780 = vsel %vm524, 1, 0
          %v781 = vsel %vm525, 1, 0
          %v782 = vsel %vm526, 1, 0
          %v783 = vsel %vm527, 1, 0
          %v784 = vsel %vm528, 1, 0
          %v785 = vsel %vm529, 1, 0
          %v786 = vsel %vm530, 1, 0
          %v787 = vsel %vm531, 1, 0
          %v788 = vsel %vm532, 1, 0
          %v789 = vsel %vm533, 1, 0
          %v790 = vsel %vm534, 1, 0
          %v791 = vsel %vm535, 1, 0
          %v792 = vsel %vm536, 1, 0
          %v793 = vsel %vm537, 1, 0
          %v794 = vsel %vm538, 1, 0
          %v795 = vsel %vm539, 1, 0
          %v796 = vsel %vm540, 1, 0
          %v797 = vsel %vm541, 1, 0
          %v798 = vsel %vm542, 1, 0
          %v799 = vsel %vm543, 1, 0
          %v800 = vsel %vm544, 1, 0
          %v801 = vsel %vm545, 1, 0
          %v802 = vsel %vm546, 1, 0
          %v803 = vsel %vm547, 1, 0
          %v804 = vsel %vm548, 1, 0
          %v805 = vsel %vm549, 1, 0
          %v806 = vsel %vm550, 1, 0
          %v807 = vsel %vm551, 1, 0
          %v808 = vsel %vm552, 1, 0
          %v809 = vsel %vm553, 1, 0
          %v810 = vsel %vm554, 1, 0
          %v811 = vsel %vm555, 1, 0
          %v812 = vsel %vm556, 1, 0
          %v813 = vsel %vm557, 1, 0
          %v814 = vsel %vm558, 1, 0
          %v815 = vsel %vm559, 1, 0
          %v816 = vsel %vm560, 1, 0
          %v817 = vsel %vm561, 1, 0
          %v818 = vsel %vm562, 1, 0
          %v819 = vsel %vm563, 1, 0
          %v820 = vsel %vm564, 1, 0
          %v821 = vsel %vm565, 1, 0
          %v822 = vsel %vm566, 1, 0
          %v823 = vsel %vm567, 1, 0
          %v824 = vsel %vm568, 1, 0
          %v825 = vsel %vm569, 1, 0
          %v826 = vsel %vm570, 1, 0
          %v827 = vsel %vm571, 1, 0
          %v828 = vsel %vm572, 1, 0
          %v829 = vsel %vm573, 1, 0
          %v830 = vsel %vm574, 1, 0
          %v831 = vsel %vm575, 1, 0
          %v832 = vsel %vm576, 1, 0
          %v833 = vsel %vm577, 1, 0
          %v834 = vsel %vm578, 1, 0
          %v835 = vsel %vm579, 1, 0
          %v836 = vsel %vm580, 1, 0
          %v837 = vsel %vm581, 1, 0
          %v838 = vsel %vm582, 1, 0
          %v839 = vsel %vm583, 1, 0
          %v840 = vsel %vm584, 1, 0
          %v841 = vsel %vm585, 1, 0
          %v842 = vsel %vm586, 1, 0
          %v843 = vsel %vm587, 1, 0
          %v844 = vsel %vm588, 1, 0
          %v845 = vsel %vm589, 1, 0
          %v846 = vsel %vm590, 1, 0
          %v847 = vsel %vm591, 1, 0
          %v848 = vsel %vm592, 1, 0
          %v849 = vsel %vm593, 1, 0
          %v850 = vsel %vm594, 1, 0
          %v851 = vsel %vm595, 1, 0
          %v852 = vsel %vm596, 1, 0
          %v853 = vsel %vm597, 1, 0
          %v854 = vsel %vm598, 1, 0
          %v855 = vsel %vm599, 1, 0
          %v856 = vsel %vm600, 1, 0
          %v857 = vcvt.s32.f32 %v601
          %v858 = vcvt.s32.f32 %v602
          %v859 = vcvt.s32.f32 %v603
          %v860 = vcvt.s32.f32 %v604
          %v861 = vcvt.s32.f32 %v605
          %v862 = vcvt.s32.f32 %v606
          %v863 = vcvt.s32.f32 %v607
          %v864 = vcvt.s32.f32 %v608
          %v865 = vcvt.s32.f32 %v609
          %v866 = vcvt.s32.f32 %v610
          %v867 = vcvt.s32.f32 %v611
          %v868 = vcvt.s32.f32 %v612
          %v869 = vcvt.s32.f32 %v613
          %v870 = vcvt.s32.f32 %v614
          %v871 = vcvt.s32.f32 %v615
          %v872 = vcvt.s32.f32 %v616
          %v873 = vcvt.s32.f32 %v617
          %v874 = vcvt.s32.f32 %v618
          %v875 = vcvt.s32.f32 %v619
          %v876 = vcvt.s32.f32 %v620
          %v877 = vcvt.s32.f32 %v621
          %v878 = vcvt.s32.f32 %v622
          %v879 = vcvt.s32.f32 %v623
          %v880 = vcvt.s32.f32 %v624
          %v881 = vcvt.s32.f32 %v625
          %v882 = vcvt.s32.f32 %v626
          %v883 = vcvt.s32.f32 %v627
          %v884 = vcvt.s32.f32 %v628
          %v885 = vcvt.s32.f32 %v629
          %v886 = vcvt.s32.f32 %v630
          %v887 = vcvt.s32.f32 %v631
          %v888 = vcvt.s32.f32 %v632
          %v889 = vcvt.s32.f32 %v633
          %v890 = vcvt.s32.f32 %v634
          %v891 = vcvt.s32.f32 %v635
          %v892 = vcvt.s32.f32 %v636
          %v893 = vcvt.s32.f32 %v637
          %v894 = vcvt.s32.f32 %v638
          %v895 = vcvt.s32.f32 %v639
          %v896 = vcvt.s32.f32 %v640
          %v897 = vcvt.s32.f32 %v641
          %v898 = vcvt.s32.f32 %v642
          %v899 = vcvt.s32.f32 %v643
          %v900 = vcvt.s32.f32 %v644
          %v901 = vcvt.s32.f32 %v645
          %v902 = vcvt.s32.f32 %v646
          %v903 = vcvt.s32.f32 %v647
          %v904 = vcvt.s32.f32 %v648
          %v905 = vcvt.s32.f32 %v649
          %v906 = vcvt.s32.f32 %v650
          %v907 = vcvt.s32.f32 %v651
          %v908 = vcvt.s32.f32 %v652
          %v909 = vcvt.s32.f32 %v653
          %v910 = vcvt.s32.f32 %v654
          %v911 = vcvt.s32.f32 %v655
          %v912 = vcvt.s32.f32 %v656
          %v913 = vcvt.s32.f32 %v657
          %v914 = vcvt.s32.f32 %v658
          %v915 = vcvt.s32.f32 %v659
          %v916 = vcvt.s32.f32 %v660
          %v917 = vcvt.s32.f32 %v661
          %v918 = vcvt.s32.f32 %v662
          %v919 = vcvt.s32.f32 %v663
          %v920 = vcvt.s32.f32 %v664
          %v921 = vcvt.s32.f32 %v665
          %v922 = vcvt.s32.f32 %v666
          %v923 = vcvt.s32.f32 %v667
          %v924 = vcvt.s32.f32 %v668
          %v925 = vcvt.s32.f32 %v669
          %v926 = vcvt.s32.f32 %v670
          %v927 = vcvt.s32.f32 %v671
          %v928 = vcvt.s32.f32 %v672
          %v929 = vcvt.s32.f32 %v673
          %v930 = vcvt.s32.f32 %v674
          %v931 = vcvt.s32.f32 %v675
          %v932 = vcvt.s32.f32 %v676
          %v933 = vcvt.s32.f32 %v677
          %v934 = vcvt.s32.f32 %v678
          %v935 = vcvt.s32.f32 %v679
          %v936 = vcvt.s32.f32 %v680
          %v937 = vcvt.s32.f32 %v681
          %v938 = vcvt.s32.f32 %v682
          %v939 = vcvt.s32.f32 %v683
          %v940 = vcvt.s32.f32 %v684
          %v941 = vcvt.s32.f32 %v685
          %v942 = vcvt.s32.f32 %v686
          %v943 = vcvt.s32.f32 %v687
          %v944 = vcvt.s32.f32 %v688
          %v945 = vcvt.s32.f32 %v689
          %v946 = vcvt.s32.f32 %v690
          %v947 = vcvt.s32.f32 %v691
          %v948 = vcvt.s32.f32 %v692
          %v949 = vcvt.s32.f32 %v693
          %v950 = vcvt.s32.f32 %v694
          %v951 = vcvt.s32.f32 %v695
          %v952 = vcvt.s32.f32 %v696
          %v953 = vcvt.s32.f32 %v697
          %v954 = vcvt.s32.f32 %v698
          %v955 = vcvt.s32.f32 %v699
          %v956 = vcvt.s32.f32 %v700
          %v957 = vcvt.s32.f32 %v701
          %v958 = vcvt.s32.f32 %v702
          %v959 = vcvt.s32.f32 %v703
          %v960 = vcvt.s32.f32 %v704
          %v961 = vcvt.s32.f32 %v705
          %v962 = vcvt.s32.f32 %v706
          %v963 = vcvt.s32.f32 %v707
          %v964 = vcvt.s32.f32 %v708
          %v965 = vcvt.s32.f32 %v709
          %v966 = vcvt.s32.f32 %v710
          %v967 = vcvt.s32.f32 %v711
          %v968 = vcvt.s32.f32 %v712
          %v969 = vcvt.s32.f32 %v713
          %v970 = vcvt.s32.f32 %v714
          %v971 = vcvt.s32.f32 %v715
          %v972 = vcvt.s32.f32 %v716
          %v973 = vcvt.s32.f32 %v717
          %v974 = vcvt.s32.f32 %v718
          %v975 = vcvt.s32.f32 %v719
          %v976 = vcvt.s32.f32 %v720
          %v977 = vcvt.s32.f32 %v721
          %v978 = vcvt.s32.f32 %v722
          %v979 = vcvt.s32.f32 %v723
          %v980 = vcvt.s32.f32 %v724
          %v981 = vcvt.s32.f32 %v725
          %v982 = vcvt.s32.f32 %v726
          %v983 = vcvt.s32.f32 %v727
          %v984 = vcvt.s32.f32 %v728
          %v985 = vcvt.s32.f32 %v729
          %v986 = vcvt.s32.f32 %v730
          %v987 = vcvt.s32.f32 %v731
          %v988 = vcvt.s32.f32 %v732
          %v989 = vcvt.s32.f32 %v733
          %v990 = vcvt.s32.f32 %v734
          %v991 = vcvt.s32.f32 %v735
          %v992 = vcvt.s32.f32 %v736
          %v993 = vcvt.s32.f32 %v737
          %v994 = vcvt.s32.f32 %v738
          %v995 = vcvt.s32.f32 %v739
          %v996 = vcvt.s32.f32 %v740
          %v997 = vcvt.s32.f32 %v741
          %v998 = vcvt.s32.f32 %v742
          %v999 = vcvt.s32.f32 %v743
          %v1000 = vcvt.s32.f32 %v744
          %v1001 = vcvt.s32.f32 %v745
          %v1002 = vcvt.s32.f32 %v746
          %v1003 = vcvt.s32.f32 %v747
          %v1004 = vcvt.s32.f32 %v748
          %v1005 = vcvt.s32.f32 %v749
          %v1006 = vcvt.s32.f32 %v750
          %v1007 = vcvt.s32.f32 %v751
          %v1008 = vcvt.s32.f32 %v752
          %v1009 = vcvt.s32.f32 %v753
          %v1010 = vcvt.s32.f32 %v754
          %v1011 = vcvt.s32.f32 %v755
          %v1012 = vcvt.s32.f32 %v756
          %v1013 = vcvt.s32.f32 %v757
          %v1014 = vcvt.s32.f32 %v758
          %v1015 = vcvt.s32.f32 %v759
          %v1016 = vcvt.s32.f32 %v760
          %v1017 = vcvt.s32.f32 %v761
          %v1018 = vcvt.s32.f32 %v762
          %v1019 = vcvt.s32.f32 %v763
          %v1020 = vcvt.s32.f32 %v764
          %v1021 = vcvt.s32.f32 %v765
          %v1022 = vcvt.s32.f32 %v766
          %v1023 = vcvt.s32.f32 %v767
          %v1024 = vcvt.s32.f32 %v768
          %v1025 = vcvt.s32.f32 %v769
          %v1026 = vcvt.s32.f32 %v770
          %v1027 = vcvt.s32.f32 %v771
          %v1028 = vcvt.s32.f32 %v772
          %v1029 = vcvt.s32.f32 %v773
          %v1030 = vcvt.s32.f32 %v774
          %v1031 = vcvt.s32.f32 %v775
          %v1032 = vcvt.s32.f32 %v776
          %v1033 = vcvt.s32.f32 %v777
          %v1034 = vcvt.s32.f32 %v778
          %v1035 = vcvt.s32.f32 %v779
          %v1036 = vcvt.s32.f32 %v780
          %v1037 = vcvt.s32.f32 %v781
          %v1038 = vcvt.s32.f32 %v782
          %v1039 = vcvt.s32.f32 %v783
          %v1040 = vcvt.s32.f32 %v784
          %v1041 = vcvt.s32.f32 %v785
          %v1042 = vcvt.s32.f32 %v786
          %v1043 = vcvt.s32.f32 %v787
          %v1044 = vcvt.s32.f32 %v788
          %v1045 = vcvt.s32.f32 %v789
          %v1046 = vcvt.s32.f32 %v790
          %v1047 = vcvt.s32.f32 %v791
          %v1048 = vcvt.s32.f32 %v792
          %v1049 = vcvt.s32.f32 %v793
          %v1050 = vcvt.s32.f32 %v794
          %v1051 = vcvt.s32.f32 %v795
          %v1052 = vcvt.s32.f32 %v796
          %v1053 = vcvt.s32.f32 %v797
          %v1054 = vcvt.s32.f32 %v798
          %v1055 = vcvt.s32.f32 %v799
          %v1056 = vcvt.s32.f32 %v800
          %v1057 = vcvt.s32.f32 %v801
          %v1058 = vcvt.s32.f32 %v802
          %v1059 = vcvt.s32.f32 %v803
          %v1060 = vcvt.s32.f32 %v804
          %v1061 = vcvt.s32.f32 %v805
          %v1062 = vcvt.s32.f32 %v806
          %v1063 = vcvt.s32.f32 %v807
          %v1064 = vcvt.s32.f32 %v808
          %v1065 = vcvt.s32.f32 %v809
          %v1066 = vcvt.s32.f32 %v810
          %v1067 = vcvt.s32.f32 %v811
          %v1068 = vcvt.s32.f32 %v812
          %v1069 = vcvt.s32.f32 %v813
          %v1070 = vcvt.s32.f32 %v814
          %v1071 = vcvt.s32.f32 %v815
          %v1072 = vcvt.s32.f32 %v816
          %v1073 = vcvt.s32.f32 %v817
          %v1074 = vcvt.s32.f32 %v818
          %v1075 = vcvt.s32.f32 %v819
          %v1076 = vcvt.s32.f32 %v820
          %v1077 = vcvt.s32.f32 %v821
          %v1078 = vcvt.s32.f32 %v822
          %v1079 = vcvt.s32.f32 %v823
          %v1080 = vcvt.s32.f32 %v824
          %v1081 = vcvt.s32.f32 %v825
          %v1082 = vcvt.s32.f32 %v826
          %v1083 = vcvt.s32.f32 %v827
          %v1084 = vcvt.s32.f32 %v828
          %v1085 = vcvt.s32.f32 %v829
          %v1086 = vcvt.s32.f32 %v830
          %v1087 = vcvt.s32.f32 %v831
          %v1088 = vcvt.s32.f32 %v832
          %v1089 = vcvt.s32.f32 %v833
          %v1090 = vcvt.s32.f32 %v834
          %v1091 = vcvt.s32.f32 %v835
          %v1092 = vcvt.s32.f32 %v836
          %v1093 = vcvt.s32.f32 %v837
          %v1094 = vcvt.s32.f32 %v838
          %v1095 = vcvt.s32.f32 %v839
          %v1096 = vcvt.s32.f32 %v840
          %v1097 = vcvt.s32.f32 %v841
          %v1098 = vcvt.s32.f32 %v842
          %v1099 = vcvt.s32.f32 %v843
          %v1100 = vcvt.s32.f32 %v844
          %v1101 = vcvt.s32.f32 %v845
          %v1102 = vcvt.s32.f32 %v846
          %v1103 = vcvt.s32.f32 %v847
          %v1104 = vcvt.s32.f32 %v848
          %v1105 = vcvt.s32.f32 %v849
          %v1106 = vcvt.s32.f32 %v850
          %v1107 = vcvt.s32.f32 %v851
          %v1108 = vcvt.s32.f32 %v852
          %v1109 = vcvt.s32.f32 %v853
          %v1110 = vcvt.s32.f32 %v854
          %v1111 = vcvt.s32.f32 %v855
          %v1112 = vcvt.s32.f32 %v856
          %v1113 = vld [vmem:[%s225] sm:$0xff]
          %v1114 = vld [vmem:[%s225 + $0x8] sm:$0xff]
          %v1115 = vld [vmem:[%s200] sm:$0xff]
          %v1116 = vld [vmem:[%s200 + $0x8] sm:$0xff]
          %v1117 = vld [vmem:[%s200 + $0x10] sm:$0xff]
          %v1118 = vld [vmem:[%s200 + $0x18] sm:$0xff]
          %v1119 = vld [vmem:[%s200 + $0x20] sm:$0xff]
          %v1120 = vld [vmem:[%s200 + $0x28] sm:$0xff]
          %v1121 = vld [vmem:[%s200 + $0x30] sm:$0xff]
          %v1122 = vld [vmem:[%s200 + $0x38] sm:$0xff]
          %1123 = vmatprep.subr.mxu0 %v978
          %1124 = vmatpush1.xpose.msra.mxu0 %v977
          %1125 = vmatprep.subr.mxu0 %v970
          %1126 = vmatpush1.xpose.msra.mxu0 %v969
          %1127 = vmatprep.subr.mxu0 %v962
          %1128 = vmatpush1.xpose.msra.mxu0 %v961
          %1129 = vmatprep.subr.mxu0 %v954
          %1130 = vmatpush1.xpose.msra.mxu0 %v953
          %1131 = vmatprep.subr.mxu0 %v946
          %1132 = vmatpush1.xpose.msra.mxu0 %v945
          %1133 = vmatprep.subr.mxu0 %v938
          %1134 = vmatpush1.xpose.msra.mxu0 %v937
          %1135 = vmatprep.subr.mxu0 %v930
          %1136 = vmatpush1.xpose.msra.mxu0 %v929
          %1137 = vmatprep.subr.mxu0 %v922
          %1138 = vmatpush1.xpose.msra.mxu0 %v921
          %1139 = vmatprep.subr.mxu0 %v914
          %1140 = vmatpush1.xpose.msra.mxu0 %v913
          %1141 = vmatprep.subr.mxu0 %v906
          %1142 = vmatpush1.xpose.msra.mxu0 %v905
          %1143 = vmatprep.subr.mxu0 %v898
          %1144 = vmatpush1.xpose.msra.mxu0 %v897
          %1145 = vmatprep.subr.mxu0 %v890
          %1146 = vmatpush1.xpose.msra.mxu0 %v889
          %1147 = vmatprep.subr.mxu0 %v882
          %1148 = vmatpush1.xpose.msra.mxu0 %v881
          %1149 = vmatprep.subr.mxu0 %v874
          %1150 = vmatpush1.xpose.msra.mxu0 %v873
          %1151 = vmatprep.subr.mxu0 %v866
          %1152 = vmatpush1.xpose.msra.mxu0 %v865
          %1153 = vmatprep.subr.mxu0 %v858
          %1154 = vmatpush1.xpose.msra.mxu0 %v857
          %1155 = vmatprep.subr.mxu0 %v1106
          %1156 = vmatpush2.xpose.msra.mxu0 %v1105
          %1157 = vmatprep.subr.mxu0 %v1098
          %1158 = vmatpush2.xpose.msra.mxu0 %v1097
          %1159 = vmatprep.subr.mxu0 %v1090
          %1160 = vmatpush2.xpose.msra.mxu0 %v1089
          %1161 = vmatprep.subr.mxu0 %v1082
          %1162 = vmatpush2.xpose.msra.mxu0 %v1081
          %1163 = vmatprep.subr.mxu0 %v1074
          %1164 = vmatpush2.xpose.msra.mxu0 %v1073
          %1165 = vmatprep.subr.mxu0 %v1066
          %1166 = vmatpush2.xpose.msra.mxu0 %v1065
          %1167 = vmatprep.subr.mxu0 %v1058
          %1168 = vmatpush2.xpose.msra.mxu0 %v1057
          %1169 = vmatprep.subr.mxu0 %v1050
          %1170 = vmatpush2.xpose.msra.mxu0 %v1049
          %1171 = vmatprep.subr.mxu0 %v1042
          %1172 = vmatpush2.xpose.msra.mxu0 %v1041
          %1173 = vmatprep.subr.mxu0 %v1034
          %1174 = vmatpush2.xpose.msra.mxu0 %v1033
          %1175 = vmatprep.subr.mxu0 %v1026
          %1176 = vmatpush2.xpose.msra.mxu0 %v1025
          %1177 = vmatprep.subr.mxu0 %v1018
          %1178 = vmatpush2.xpose.msra.mxu0 %v1017
          %1179 = vmatprep.subr.mxu0 %v1010
          %1180 = vmatpush2.xpose.msra.mxu0 %v1009
          %1181 = vmatprep.subr.mxu0 %v1002
          %1182 = vmatpush2.xpose.msra.mxu0 %v1001
          %1183 = vmatprep.subr.mxu0 %v994
          %1184 = vmatpush2.xpose.msra.mxu0 %v993
          %1185 = vmatprep.subr.mxu0 %v986
          %1186 = vmatpush2.xpose.msra.mxu0 %v985
          %1187 = vmatprep.mubr.f32.mxu0 %v1116
          %1188 = vmatmul.mubr.f32.gmra.mxu0 %v1115
          %v1189 = vpop.f32.mrf.mxu0
          %v1190 = vadd.f32 0.0, %v1189
          %v1191 = vpop.f32.mrf.mxu0
          %v1192 = vadd.f32 0.0, %v1191
          %1193 = vdwg.mxu0
          %1194 = vmatprep.subr.mxu0 %v980
          %1195 = vmatpush1.xpose.msra.mxu0 %v979
          %1196 = vmatprep.subr.mxu0 %v972
          %1197 = vmatpush1.xpose.msra.mxu0 %v971
          %1198 = vmatprep.subr.mxu0 %v964
          %1199 = vmatpush1.xpose.msra.mxu0 %v963
          %1200 = vmatprep.subr.mxu0 %v956
          %1201 = vmatpush1.xpose.msra.mxu0 %v955
          %1202 = vmatprep.subr.mxu0 %v948
          %1203 = vmatpush1.xpose.msra.mxu0 %v947
          %1204 = vmatprep.subr.mxu0 %v940
          %1205 = vmatpush1.xpose.msra.mxu0 %v939
          %1206 = vmatprep.subr.mxu0 %v932
          %1207 = vmatpush1.xpose.msra.mxu0 %v931
          %1208 = vmatprep.subr.mxu0 %v924
          %1209 = vmatpush1.xpose.msra.mxu0 %v923
          %1210 = vmatprep.subr.mxu0 %v916
          %1211 = vmatpush1.xpose.msra.mxu0 %v915
          %1212 = vmatprep.subr.mxu0 %v908
          %1213 = vmatpush1.xpose.msra.mxu0 %v907
          %1214 = vmatprep.subr.mxu0 %v900
          %1215 = vmatpush1.xpose.msra.mxu0 %v899
          %1216 = vmatprep.subr.mxu0 %v892
          %1217 = vmatpush1.xpose.msra.mxu0 %v891
          %1218 = vmatprep.subr.mxu0 %v884
          %1219 = vmatpush1.xpose.msra.mxu0 %v883
          %1220 = vmatprep.subr.mxu0 %v876
          %1221 = vmatpush1.xpose.msra.mxu0 %v875
          %1222 = vmatprep.subr.mxu0 %v868
          %1223 = vmatpush1.xpose.msra.mxu0 %v867
          %1224 = vmatprep.subr.mxu0 %v860
          %1225 = vmatpush1.xpose.msra.mxu0 %v859
          %1226 = vmatprep.subr.mxu0 %v1108
          %1227 = vmatpush2.xpose.msra.mxu0 %v1107
          %1228 = vmatprep.subr.mxu0 %v1100
          %1229 = vmatpush2.xpose.msra.mxu0 %v1099
          %1230 = vmatprep.subr.mxu0 %v1092
          %1231 = vmatpush2.xpose.msra.mxu0 %v1091
          %1232 = vmatprep.subr.mxu0 %v1084
          %1233 = vmatpush2.xpose.msra.mxu0 %v1083
          %1234 = vmatprep.subr.mxu0 %v1076
          %1235 = vmatpush2.xpose.msra.mxu0 %v1075
          %1236 = vmatprep.subr.mxu0 %v1068
          %1237 = vmatpush2.xpose.msra.mxu0 %v1067
          %1238 = vmatprep.subr.mxu0 %v1060
          %1239 = vmatpush2.xpose.msra.mxu0 %v1059
          %1240 = vmatprep.subr.mxu0 %v1052
          %1241 = vmatpush2.xpose.msra.mxu0 %v1051
          %1242 = vmatprep.subr.mxu0 %v1044
          %1243 = vmatpush2.xpose.msra.mxu0 %v1043
          %1244 = vmatprep.subr.mxu0 %v1036
          %1245 = vmatpush2.xpose.msra.mxu0 %v1035
          %1246 = vmatprep.subr.mxu0 %v1028
          %1247 = vmatpush2.xpose.msra.mxu0 %v1027
          %1248 = vmatprep.subr.mxu0 %v1020
          %1249 = vmatpush2.xpose.msra.mxu0 %v1019
          %1250 = vmatprep.subr.mxu0 %v1012
          %1251 = vmatpush2.xpose.msra.mxu0 %v1011
          %1252 = vmatprep.subr.mxu0 %v1004
          %1253 = vmatpush2.xpose.msra.mxu0 %v1003
          %1254 = vmatprep.subr.mxu0 %v996
          %1255 = vmatpush2.xpose.msra.mxu0 %v995
          %1256 = vmatprep.subr.mxu0 %v988
          %1257 = vmatpush2.xpose.msra.mxu0 %v987
          %1258 = vmatprep.mubr.f32.mxu0 %v1118
          %1259 = vmatmul.mubr.f32.gmra.mxu0 %v1117
          %v1260 = vpop.f32.mrf.mxu0
          %v1261 = vadd.f32 %v1190, %v1260
          %v1262 = vpop.f32.mrf.mxu0
          %v1263 = vadd.f32 %v1192, %v1262
          %1264 = vdwg.mxu0
          %1265 = vmatprep.subr.mxu0 %v982
          %1266 = vmatpush1.xpose.msra.mxu0 %v981
          %1267 = vmatprep.subr.mxu0 %v974
          %1268 = vmatpush1.xpose.msra.mxu0 %v973
          %1269 = vmatprep.subr.mxu0 %v966
          %1270 = vmatpush1.xpose.msra.mxu0 %v965
          %1271 = vmatprep.subr.mxu0 %v958
          %1272 = vmatpush1.xpose.msra.mxu0 %v957
          %1273 = vmatprep.subr.mxu0 %v950
          %1274 = vmatpush1.xpose.msra.mxu0 %v949
          %1275 = vmatprep.subr.mxu0 %v942
          %1276 = vmatpush1.xpose.msra.mxu0 %v941
          %1277 = vmatprep.subr.mxu0 %v934
          %1278 = vmatpush1.xpose.msra.mxu0 %v933
          %1279 = vmatprep.subr.mxu0 %v926
          %1280 = vmatpush1.xpose.msra.mxu0 %v925
          %1281 = vmatprep.subr.mxu0 %v918
          %1282 = vmatpush1.xpose.msra.mxu0 %v917
          %1283 = vmatprep.subr.mxu0 %v910
          %1284 = vmatpush1.xpose.msra.mxu0 %v909
          %1285 = vmatprep.subr.mxu0 %v902
          %1286 = vmatpush1.xpose.msra.mxu0 %v901
          %1287 = vmatprep.subr.mxu0 %v894
          %1288 = vmatpush1.xpose.msra.mxu0 %v893
          %1289 = vmatprep.subr.mxu0 %v886
          %1290 = vmatpush1.xpose.msra.mxu0 %v885
          %1291 = vmatprep.subr.mxu0 %v878
          %1292 = vmatpush1.xpose.msra.mxu0 %v877
          %1293 = vmatprep.subr.mxu0 %v870
          %1294 = vmatpush1.xpose.msra.mxu0 %v869
          %1295 = vmatprep.subr.mxu0 %v862
          %1296 = vmatpush1.xpose.msra.mxu0 %v861
          %1297 = vmatprep.subr.mxu0 %v1110
          %1298 = vmatpush2.xpose.msra.mxu0 %v1109
          %1299 = vmatprep.subr.mxu0 %v1102
          %1300 = vmatpush2.xpose.msra.mxu0 %v1101
          %1301 = vmatprep.subr.mxu0 %v1094
          %1302 = vmatpush2.xpose.msra.mxu0 %v1093
          %1303 = vmatprep.subr.mxu0 %v1086
          %1304 = vmatpush2.xpose.msra.mxu0 %v1085
          %1305 = vmatprep.subr.mxu0 %v1078
          %1306 = vmatpush2.xpose.msra.mxu0 %v1077
          %1307 = vmatprep.subr.mxu0 %v1070
          %1308 = vmatpush2.xpose.msra.mxu0 %v1069
          %1309 = vmatprep.subr.mxu0 %v1062
          %1310 = vmatpush2.xpose.msra.mxu0 %v1061
          %1311 = vmatprep.subr.mxu0 %v1054
          %1312 = vmatpush2.xpose.msra.mxu0 %v1053
          %1313 = vmatprep.subr.mxu0 %v1046
          %1314 = vmatpush2.xpose.msra.mxu0 %v1045
          %1315 = vmatprep.subr.mxu0 %v1038
          %1316 = vmatpush2.xpose.msra.mxu0 %v1037
          %1317 = vmatprep.subr.mxu0 %v1030
          %1318 = vmatpush2.xpose.msra.mxu0 %v1029
          %1319 = vmatprep.subr.mxu0 %v1022
          %1320 = vmatpush2.xpose.msra.mxu0 %v1021
          %1321 = vmatprep.subr.mxu0 %v1014
          %1322 = vmatpush2.xpose.msra.mxu0 %v1013
          %1323 = vmatprep.subr.mxu0 %v1006
          %1324 = vmatpush2.xpose.msra.mxu0 %v1005
          %1325 = vmatprep.subr.mxu0 %v998
          %1326 = vmatpush2.xpose.msra.mxu0 %v997
          %1327 = vmatprep.subr.mxu0 %v990
          %1328 = vmatpush2.xpose.msra.mxu0 %v989
          %1329 = vmatprep.mubr.f32.mxu0 %v1120
          %1330 = vmatmul.mubr.f32.gmra.mxu0 %v1119
          %v1331 = vpop.f32.mrf.mxu0
          %v1332 = vadd.f32 %v1261, %v1331
          %v1333 = vpop.f32.mrf.mxu0
          %v1334 = vadd.f32 %v1263, %v1333
          %1335 = vdwg.mxu0
          %1336 = vmatprep.subr.mxu0 %v984
          %1337 = vmatpush1.xpose.msra.mxu0 %v983
          %1338 = vmatprep.subr.mxu0 %v976
          %1339 = vmatpush1.xpose.msra.mxu0 %v975
          %1340 = vmatprep.subr.mxu0 %v968
          %1341 = vmatpush1.xpose.msra.mxu0 %v967
          %1342 = vmatprep.subr.mxu0 %v960
          %1343 = vmatpush1.xpose.msra.mxu0 %v959
          %1344 = vmatprep.subr.mxu0 %v952
          %1345 = vmatpush1.xpose.msra.mxu0 %v951
          %1346 = vmatprep.subr.mxu0 %v944
          %1347 = vmatpush1.xpose.msra.mxu0 %v943
          %1348 = vmatprep.subr.mxu0 %v936
          %1349 = vmatpush1.xpose.msra.mxu0 %v935
          %1350 = vmatprep.subr.mxu0 %v928
          %1351 = vmatpush1.xpose.msra.mxu0 %v927
          %1352 = vmatprep.subr.mxu0 %v920
          %1353 = vmatpush1.xpose.msra.mxu0 %v919
          %1354 = vmatprep.subr.mxu0 %v912
          %1355 = vmatpush1.xpose.msra.mxu0 %v911
          %1356 = vmatprep.subr.mxu0 %v904
          %1357 = vmatpush1.xpose.msra.mxu0 %v903
          %1358 = vmatprep.subr.mxu0 %v896
          %1359 = vmatpush1.xpose.msra.mxu0 %v895
          %1360 = vmatprep.subr.mxu0 %v888
          %1361 = vmatpush1.xpose.msra.mxu0 %v887
          %1362 = vmatprep.subr.mxu0 %v880
          %1363 = vmatpush1.xpose.msra.mxu0 %v879
          %1364 = vmatprep.subr.mxu0 %v872
          %1365 = vmatpush1.xpose.msra.mxu0 %v871
          %1366 = vmatprep.subr.mxu0 %v864
          %1367 = vmatpush1.xpose.msra.mxu0 %v863
          %1368 = vmatprep.subr.mxu0 %v1112
          %1369 = vmatpush2.xpose.msra.mxu0 %v1111
          %1370 = vmatprep.subr.mxu0 %v1104
          %1371 = vmatpush2.xpose.msra.mxu0 %v1103
          %1372 = vmatprep.subr.mxu0 %v1096
          %1373 = vmatpush2.xpose.msra.mxu0 %v1095
          %1374 = vmatprep.subr.mxu0 %v1088
          %1375 = vmatpush2.xpose.msra.mxu0 %v1087
          %1376 = vmatprep.subr.mxu0 %v1080
          %1377 = vmatpush2.xpose.msra.mxu0 %v1079
          %1378 = vmatprep.subr.mxu0 %v1072
          %1379 = vmatpush2.xpose.msra.mxu0 %v1071
          %1380 = vmatprep.subr.mxu0 %v1064
          %1381 = vmatpush2.xpose.msra.mxu0 %v1063
          %1382 = vmatprep.subr.mxu0 %v1056
          %1383 = vmatpush2.xpose.msra.mxu0 %v1055
          %1384 = vmatprep.subr.mxu0 %v1048
          %1385 = vmatpush2.xpose.msra.mxu0 %v1047
          %1386 = vmatprep.subr.mxu0 %v1040
          %1387 = vmatpush2.xpose.msra.mxu0 %v1039
          %1388 = vmatprep.subr.mxu0 %v1032
          %1389 = vmatpush2.xpose.msra.mxu0 %v1031
          %1390 = vmatprep.subr.mxu0 %v1024
          %1391 = vmatpush2.xpose.msra.mxu0 %v1023
          %1392 = vmatprep.subr.mxu0 %v1016
          %1393 = vmatpush2.xpose.msra.mxu0 %v1015
          %1394 = vmatprep.subr.mxu0 %v1008
          %1395 = vmatpush2.xpose.msra.mxu0 %v1007
          %1396 = vmatprep.subr.mxu0 %v1000
          %1397 = vmatpush2.xpose.msra.mxu0 %v999
          %1398 = vmatprep.subr.mxu0 %v992
          %1399 = vmatpush2.xpose.msra.mxu0 %v991
          %1400 = vmatprep.mubr.f32.mxu0 %v1122
          %1401 = vmatmul.mubr.f32.gmra.mxu0 %v1121
          %v1402 = vpop.f32.mrf.mxu0
          %v1403 = vadd.f32 %v1332, %v1402
          %v1404 = vpop.f32.mrf.mxu0
          %v1405 = vadd.f32 %v1334, %v1404
          %1406 = vdwg.mxu0
          %v1407 = vadd.f32 %v1113, %v1403
          %v1408 = vadd.f32 %v1114, %v1405
          %1409 = vst [vmem:[%s225] sm:$0xff] %v1407
          %1410 = vst [vmem:[%s225 + $0x8] sm:$0xff] %v1408
        $region44: #{tpu_custom_call.1} parent=27 // pred_fallthru
          _
        %s1411 = sand.u32 %s108, 1
        %s1412 = scalar_lea.sflag [#allocation9], %s1411
        %s1413 = sand.u32 %s108, 1
        %s1414 = smul.addr %s1413, 16
        %s1415 = scalar_lea.vmem [#allocation12], %s1414
        // Predicated region
        $region45: #{tpu_custom_call.1} parent=27 // pred_check
          %p1416 = pneg %p118
        $region46: #{tpu_custom_call.1} parent=27 // pred_check_branch
          %1418 = sbr.rel (%p1416) target = $region48
        $region47: #{tpu_custom_call.1} parent=27 // pred_region
          %s1419 = sld [smem:[#allocation3 + %s42]]
          %s1420 = smul.u32 2, %s1419
          %s1422 = ssub.s32 256, 256
          %1423 = vsyncadd %s1412, %s1422
          %s1424 = smul.addr %s1420, 128
          %s1425 = scalar_lea.hbm %s6, %s1424
          %s1427 = sshll.u32 %s1415, 4
          %s1428 = int_to_ptr.vmem [resolvable:$true] %s1427
          %1430 = dma.vmem_to_hbm [thread:$0]  %s1428, 256, %s1425, %s1412
        $region48: #{tpu_custom_call.1} parent=27 // pred_fallthru
          _
      $region28: #{tpu_custom_call.1} parent=5 // pred_fallthru
        _
      %p1431 = scmp.le.s32.totalorder 2, %s37
      // Predicated region
      $region49: #{tpu_custom_call.1} parent=5 // pred_check
        %p1432 = pneg %p1431
      $region50: #{tpu_custom_call.1} parent=5 // pred_check_branch
        %1434 = sbr.rel (%p1432) target = $region52
      $region51: #{tpu_custom_call.1} parent=5 // pred_region
        %s1435 = ssub.s32 %s37, 2
        // Predicated region
        $region53: #{tpu_custom_call.1} parent=51 // pred_check
          %p1436 = pneg %p124
        $region54: #{tpu_custom_call.1} parent=51 // pred_check_branch
          %1438 = sbr.rel (%p1436) target = $region56
        $region55: #{tpu_custom_call.1} parent=51 // pred_region
          %s1439 = sand.u32 %s109, 1
          %s1440 = scalar_lea.sflag [#allocation9], %s1439
          %s1441 = sand.u32 %s109, 1
          %s1442 = smul.addr %s1441, 16
          %s1443 = scalar_lea.vmem [#allocation12], %s1442
          %1444 = dma.done %s1440, 256
        $region56: #{tpu_custom_call.1} parent=51 // pred_fallthru
          _
      $region52: #{tpu_custom_call.1} parent=5 // pred_fallthru
        _
    $region6: #{tpu_custom_call.1} parent=1 // loop_footer
      %s41 = sadd.s32 1, %s37
    $region7: #{tpu_custom_call.1} parent=1 // loop_footer_branch
      %36 = sbr.rel target = $region3
    $region8: #{tpu_custom_call.1} parent=1 // loop_exit
      _
    %1445 = vsyncpa [#allocation8], 1
    %s1446 = scalar_lea.sflag [#allocation8], 1
    %1447 = vsyncpa %s1446, 1
    %1448 = vsyncpa [#allocation11], 1
    %s1449 = scalar_lea.sflag [#allocation11], 1
    %1450 = vsyncpa %s1449, 1
    %1451 = vsyncpa [#allocation9], 1
    %s1452 = scalar_lea.sflag [#allocation9], 1
    %1453 = vsyncpa %s1452, 1

</llo_original>
